<compile_context>
chip_gen: v6e
topology: v6e:2x2x1
jax: 0.10.0
libtpu: 0.0.40
codegen_flags: <defaults>
</compile_context>

<pallas_src>
import functools

import jax
import jax.numpy as jnp
from jax.experimental import pallas as pl
from jax.experimental.pallas import tpu as pltpu


def _scorer_proj_kernel(x_ref, w_ref, p_ref, o_ref, *, eps, p_true):
    # x_ref: (tm, H) activation dtype; w_ref: (H, P_pad) same dtype (pre-cast /
    # pre-transposed in the wrapper, no per-step XLU transpose or VALU cast);
    # p_ref: (3, P_pad) f32 rows = [bias, gamma, beta]; o_ref: (tm, P_pad).
    x = x_ref[...]
    w = w_ref[...]
    params = p_ref[...]

    precision = (jax.lax.Precision.HIGHEST
                 if (x.dtype == jnp.float32 and w.dtype == jnp.float32) else None)
    # y = x @ W^T + b, contracting H against the weight's leading (K) axis.
    y = jax.lax.dot_general(
        x, w,
        dimension_numbers=(((1,), (0,)), ((), ())),
        preferred_element_type=jnp.float32,
        precision=precision,
    ) + params[0:1, :]

    p_pad = y.shape[-1]
    inv_p = 1.0 / float(p_true)
    if p_pad != p_true:
        # Padded weight columns / bias are zero, so sum(y) over all lanes equals
        # the sum over the true P columns; only the centered term needs masking.
        lane = jax.lax.broadcasted_iota(jnp.int32, y.shape, dimension=1)
        mask = lane < p_true
        mean = jnp.sum(y, axis=-1, keepdims=True) * inv_p
        centered = jnp.where(mask, y - mean, 0.0)
    else:
        mean = jnp.sum(y, axis=-1, keepdims=True) * inv_p
        centered = y - mean
    var = jnp.sum(centered * centered, axis=-1, keepdims=True) * inv_p
    y_hat = centered * jax.lax.rsqrt(var + eps)       # rsqrt -> EUP slot
    o_ref[...] = (y_hat * params[1:2, :] + params[2:3, :]).astype(o_ref.dtype)


def _round_up(x, m):
    return ((x + m - 1) // m) * m


def _sublane_granule(dtype):
    # f32 -> 8, bf16 -> 16, int8/fp8 -> 32 (keeps sublane packing unmasked).
    itemsize = jnp.dtype(dtype).itemsize
    return 8 * max(1, 4 // max(1, itemsize))


def _vmem_estimate(tile_m, H, P_pad, x_bytes, w_bytes, out_bytes):
    return (2 * tile_m * H * x_bytes          # x tile, double-buffered
            + 1 * H * P_pad * w_bytes         # resident weight, single-buffered
            + 2 * tile_m * P_pad * out_bytes  # output tile, double-buffered
            + 3 * tile_m * P_pad * 4          # f32 LN intermediates (y, centered, y_hat)
            + 8 * P_pad * 4                   # fused bias/gamma/beta (padded to 8 sublanes)
            + (1 << 20))                      # Mosaic internal scratch headroom


def _tpu_vmem_and_cores():
    """Return (per-core VMEM bytes, is_multi_tensorcore_chip)."""
    vmem = None
    try:
        vmem = int(pltpu.get_tpu_info().vmem_capacity_bytes)
    except Exception:
        vmem = None
    kind = ""
    try:
        kind = jax.devices()[0].device_kind.lower()
    except Exception:
        kind = ""
    if vmem is None:
        if "v5" in kind or "v6" in kind:
            vmem = 128 << 20
        else:
            vmem = 64 << 20          # conservative (v7x-sized) default
    multi_core = ("v7" in kind) or (vmem <= (64 << 20) and "v5" not in kind
                                    and "v6" not in kind)
    return vmem, multi_core


def _pick_tile_m(M, H, P_pad, x_bytes, w_bytes, out_bytes, granule,
                 vmem_budget, multi_core):
    if M <= granule:
        return M
    m_ceil = _round_up(M, granule)
    tile = min(m_ceil, 2048)
    if multi_core:
        # Keep >= 2 grid steps so both v7x TensorCores get work.
        tile = min(tile, _round_up(pl.cdiv(M, 2), granule))
    tile = max(tile, granule)
    while tile > granule and _vmem_estimate(tile, H, P_pad, x_bytes, w_bytes,
                                            out_bytes) > vmem_budget:
        tile = max(granule, _round_up(tile // 2, granule))
    if tile >= 256:
        tile = (tile // 128) * 128   # 128-aligned M tiles keep MXU passes clean (v5e)
    if multi_core:
        steps = pl.cdiv(M, tile)
        if steps > 1 and steps % 2 == 1:
            alt = _round_up(pl.cdiv(M, steps + 1), granule)
            if (alt >= granule
                    and _vmem_estimate(alt, H, P_pad, x_bytes, w_bytes,
                                       out_bytes) <= vmem_budget):
                tile = alt
    return min(tile, m_ceil)


def m3_retriever_scorer_projection(hidden_states, weight, bias, gamma, beta,
                                   *, eps=1e-12, tile_m=None):
    """hidden_states: [..., H]; weight: [P, H] (PyTorch Linear layout);
    bias/gamma/beta: [P]. Returns [..., P] in hidden_states.dtype."""
    orig_shape = hidden_states.shape
    H = orig_shape[-1]
    P = weight.shape[0]

    x2d = hidden_states.reshape(-1, H)
    M = x2d.shape[0]

    # Hoist dtype harmonization into the wrapper: stream everything at the
    # activation width (bf16 activations keep the weight in bf16 -> full-rate MXU).
    if jnp.issubdtype(x2d.dtype, jnp.floating):
        compute_dtype = x2d.dtype
    else:
        compute_dtype = jnp.float32
        x2d = x2d.astype(compute_dtype)
    out_dtype = compute_dtype

    # Hoist the transpose: (P, H) -> MXU-native (H, P), pad P to lane-dense 128.
    P_pad = _round_up(P, 128)
    w_t = jnp.swapaxes(weight, 0, 1).astype(compute_dtype)
    if P_pad != P:
        w_t = jnp.pad(w_t, ((0, 0), (0, P_pad - P)))
    pad = (0, P_pad - P)
    params = jnp.stack([
        jnp.pad(bias.astype(jnp.float32), pad),
        jnp.pad(gamma.astype(jnp.float32), pad),
        jnp.pad(beta.astype(jnp.float32), pad),
    ], axis=0)                                   # (3, P_pad) f32, resident

    x_bytes = jnp.dtype(compute_dtype).itemsize
    w_bytes = x_bytes
    out_bytes = jnp.dtype(out_dtype).itemsize
    granule = _sublane_granule(compute_dtype)

    vmem_cap, multi_core = _tpu_vmem_and_cores()
    if vmem_cap >= (96 << 20):                   # v5e / v6e: 128 MiB per core
        vmem_budget, limit_cap = 96 << 20, 110 << 20
    else:                                        # v7x: 64 MiB per core
        vmem_budget, limit_cap = 44 << 20, 48 << 20

    if tile_m is None:
        tile_m = _pick_tile_m(M, H, P_pad, x_bytes, w_bytes, out_bytes,
                              granule, vmem_budget, multi_core)
    if M <= granule or tile_m >= M:
        tile_m = M if M <= granule else min(tile_m, _round_up(M, granule))
    else:
        tile_m = max(granule, (tile_m // granule) * granule)

    est = _vmem_estimate(tile_m, H, P_pad, x_bytes, w_bytes, out_bytes)
    vmem_limit = int(min(limit_cap, max(est + (4 << 20), 16 << 20)))

    cost = pl.CostEstimate(
        flops=2 * M * P_pad * H + 8 * M * P_pad,
        transcendentals=M,
        bytes_accessed=(M * H * x_bytes + H * P_pad * w_bytes
                        + M * P_pad * out_bytes + 3 * P_pad * 4),
    )

    kernel = functools.partial(_scorer_proj_kernel, eps=float(eps), p_true=P)
    grid = (pl.cdiv(M, tile_m),)

    def _make_call(single_buffer):
        def _const_spec(shape):
            idx = lambda i: (0,) * len(shape)
            if single_buffer:
                # Grid-invariant operands: fetched once, no double buffer.
                return pl.BlockSpec(shape, idx, pipeline_mode=pl.Buffered(1))
            return pl.BlockSpec(shape, idx)

        return pl.pallas_call(
            kernel,
            out_shape=jax.ShapeDtypeStruct((M, P_pad), out_dtype),
            grid_spec=pltpu.PrefetchScalarGridSpec(
                num_scalar_prefetch=0,
                grid=grid,
                in_specs=[
                    pl.BlockSpec((tile_m, H), lambda i: (i, 0)),   # x tile
                    _const_spec((H, P_pad)),                       # weight (K, N)
                    _const_spec((3, P_pad)),                       # bias/gamma/beta
                ],
                out_specs=pl.BlockSpec((tile_m, P_pad), lambda i: (i, 0)),
            ),
            compiler_params=pltpu.CompilerParams(
                dimension_semantics=("parallel",),
                vmem_limit_bytes=vmem_limit),
            cost_estimate=cost,
        )

    try:
        out2d = _make_call(True)(x2d, w_t, params)
    except Exception:
        # Fallback for runtimes without single-buffer pipeline_mode support.
        out2d = _make_call(False)(x2d, w_t, params)

    if P_pad != P:
        out2d = out2d[:, :P]
    return out2d.reshape(orig_shape[:-1] + (P,))


if __name__ == "__main__":
    # Small config: hidden_size=32, projected_size=64, layer_norm_eps=1e-12
    B, S, H, P = 2, 8, 32, 64
    eps = 1e-12

    key = jax.random.PRNGKey(0)
    k_x, k_w, k_b, k_g, k_beta = jax.random.split(key, 5)

    hidden_states = jax.random.normal(k_x, (B, S, H), dtype=jnp.float32)
    # Deterministic synthetic parameters (not a checkpoint load)
    weight = jax.random.normal(k_w, (P, H), dtype=jnp.float32) * 0.02
    bias = jax.random.normal(k_b, (P,), dtype=jnp.float32) * 0.02
    gamma = jnp.ones((P,), dtype=jnp.float32) + 0.01 * jax.random.normal(k_g, (P,))
    beta = 0.01 * jax.random.normal(k_beta, (P,), dtype=jnp.float32)

    out = m3_retriever_scorer_projection(hidden_states, weight, bias, gamma, beta,
                                         eps=eps)
    out = jax.block_until_ready(out)

    # Pure-JAX reference (full-precision matmul to match the kernel's f32 path)
    y_ref = jnp.einsum("bsh,ph->bsp", hidden_states, weight,
                       precision=jax.lax.Precision.HIGHEST) + bias
    mean = jnp.mean(y_ref, axis=-1, keepdims=True)
    var = jnp.mean((y_ref - mean) ** 2, axis=-1, keepdims=True)
    y_ref = (y_ref - mean) / jnp.sqrt(var + eps) * gamma + beta

    assert out.shape == (B, S, P)
    assert out.dtype == hidden_states.dtype
    assert jnp.allclose(out, y_ref, atol=5e-4, rtol=5e-4)

    print("KERNEL_OK")
</pallas_src>

<mosaic_0001>
module attributes {stable_mosaic.version = 11 : i64} {
  func.func @_scorer_proj_kernel(%arg0: i32, %arg1: memref<8x32xf32, #tpu.memory_space<vmem>>, %arg2: memref<32x128xf32, #tpu.memory_space<vmem>>, %arg3: memref<3x128xf32, #tpu.memory_space<vmem>>, %arg4: memref<8x128xf32, #tpu.memory_space<vmem>>) attributes {dimension_semantics = [#tpu.dimension_semantics<parallel>], iteration_bounds = array<i64: 2>, scalar_prefetch = 0 : i64, scratch_operands = 0 : i64, tpu.core_type = #tpu.core_type<tc>, window_params = [{transform_indices = @transform_0, window_bounds = array<i64: 8, 32>}, {pipeline_mode = #tpu.pipeline_mode<synchronous>, transform_indices = @transform_1, window_bounds = array<i64: 32, 128>}, {pipeline_mode = #tpu.pipeline_mode<synchronous>, transform_indices = @transform_2, window_bounds = array<i64: 3, 128>}, {transform_indices = @transform_3, window_bounds = array<i64: 8, 128>}]} {
    %c0 = arith.constant 0 : index
    %c0_0 = arith.constant 0 : index
    %0 = vector.load %arg1[%c0, %c0_0] : memref<8x32xf32, #tpu.memory_space<vmem>>, vector<8x32xf32>
    %c0_1 = arith.constant 0 : index
    %c0_2 = arith.constant 0 : index
    %1 = vector.load %arg2[%c0_1, %c0_2] : memref<32x128xf32, #tpu.memory_space<vmem>>, vector<32x128xf32>
    %c0_3 = arith.constant 0 : index
    %c0_4 = arith.constant 0 : index
    %2 = vector.load %arg3[%c0_3, %c0_4] : memref<3x128xf32, #tpu.memory_space<vmem>>, vector<3x128xf32>
    %cst = arith.constant dense<0.000000e+00> : vector<8x128xf32>
    %3 = tpu.matmul %0, %1, %cst {dimension_numbers = #tpu.dot_dimension_numbers<[1], [0], [0], [1], [0, 0, 1, 1], [], []>, precision = #tpu.contract_precision<fp32>} : vector<8x32xf32>, vector<32x128xf32>, vector<8x128xf32> -> vector<8x128xf32>
    %4 = vector.extract_strided_slice %2 {offsets = [0, 0], sizes = [1, 128], strides = [1, 1]} : vector<3x128xf32> to vector<1x128xf32>
    %5 = vector.broadcast %4 : vector<1x128xf32> to vector<8x128xf32>
    %6 = arith.addf %3, %5 : vector<8x128xf32>
    %7 = tpu.iota {dimensions = array<i32: 1>} : vector<8x128xi32>
    %c64_i32 = arith.constant 64 : i32
    %8 = vector.broadcast %c64_i32 : i32 to vector<8x128xi32>
    %9 = arith.cmpi slt, %7, %8 : vector<8x128xi32>
    %cst_5 = arith.constant dense<0.000000e+00> : vector<8xf32>
    %10 = vector.multi_reduction <add>, %6, %cst_5 [1] : vector<8x128xf32> to vector<8xf32>
    %11 = vector.shape_cast %10 : vector<8xf32> to vector<8x1xf32>
    %cst_6 = arith.constant 1.562500e-02 : f32
    %12 = vector.broadcast %cst_6 : f32 to vector<8x1xf32>
    %13 = arith.mulf %11, %12 : vector<8x1xf32>
    %14 = vector.broadcast %13 : vector<8x1xf32> to vector<8x128xf32>
    %15 = arith.subf %6, %14 : vector<8x128xf32>
    %cst_7 = arith.constant 0.000000e+00 : f32
    %16 = vector.broadcast %cst_7 : f32 to vector<8x128xf32>
    %17 = arith.select %9, %15, %16 : vector<8x128xi1>, vector<8x128xf32>
    %18 = arith.mulf %17, %17 : vector<8x128xf32>
    %cst_8 = arith.constant dense<0.000000e+00> : vector<8xf32>
    %19 = vector.multi_reduction <add>, %18, %cst_8 [1] : vector<8x128xf32> to vector<8xf32>
    %20 = vector.shape_cast %19 : vector<8xf32> to vector<8x1xf32>
    %cst_9 = arith.constant 1.562500e-02 : f32
    %21 = vector.broadcast %cst_9 : f32 to vector<8x1xf32>
    %22 = arith.mulf %20, %21 : vector<8x1xf32>
    %cst_10 = arith.constant 9.99999996E-13 : f32
    %23 = vector.broadcast %cst_10 : f32 to vector<8x1xf32>
    %24 = arith.addf %22, %23 : vector<8x1xf32>
    %25 = math.rsqrt %24 : vector<8x1xf32>
    %26 = vector.broadcast %25 : vector<8x1xf32> to vector<8x128xf32>
    %27 = arith.mulf %17, %26 : vector<8x128xf32>
    %28 = vector.extract_strided_slice %2 {offsets = [1, 0], sizes = [1, 128], strides = [1, 1]} : vector<3x128xf32> to vector<1x128xf32>
    %29 = vector.broadcast %28 : vector<1x128xf32> to vector<8x128xf32>
    %30 = arith.mulf %27, %29 : vector<8x128xf32>
    %31 = vector.extract_strided_slice %2 {offsets = [2, 0], sizes = [1, 128], strides = [1, 1]} : vector<3x128xf32> to vector<1x128xf32>
    %32 = vector.broadcast %31 : vector<1x128xf32> to vector<8x128xf32>
    %33 = arith.addf %30, %32 : vector<8x128xf32>
    %c0_11 = arith.constant 0 : index
    %c0_12 = arith.constant 0 : index
    %34 = vector.load %arg4[%c0_11, %c0_12] : memref<8x128xf32, #tpu.memory_space<vmem>>, vector<8x128xf32>
    tpu.vector_store %arg4[%c0_11, %c0_12], %33 {strides = array<i32>} : memref<8x128xf32, #tpu.memory_space<vmem>>, vector<8x128xf32>,
    return
  }
  func.func @transform_0(%arg0: i32) -> (i32, i32) {
    %c0_i32 = arith.constant 0 : i32
    %c0_i32_0 = arith.constant 0 : i32
    return %arg0, %c0_i32 : i32, i32
  }
  func.func @transform_1(%arg0: i32) -> (i32, i32) {
    %c0_i32 = arith.constant 0 : i32
    %c0_i32_0 = arith.constant 0 : i32
    %c0_i32_1 = arith.constant 0 : i32
    return %c0_i32, %c0_i32_0 : i32, i32
  }
  func.func @transform_2(%arg0: i32) -> (i32, i32) {
    %c0_i32 = arith.constant 0 : i32
    %c0_i32_0 = arith.constant 0 : i32
    %c0_i32_1 = arith.constant 0 : i32
    return %c0_i32, %c0_i32_0 : i32, i32
  }
  func.func @transform_3(%arg0: i32) -> (i32, i32) {
    %c0_i32 = arith.constant 0 : i32
    %c0_i32_0 = arith.constant 0 : i32
    return %arg0, %c0_i32 : i32, i32
  }
}

module attributes {stable_mosaic.version = 11 : i64} {
  func.func @_scorer_proj_kernel(%arg0: i32, %arg1: memref<8x32xf32, #tpu.memory_space<vmem>>, %arg2: memref<32x128xf32, #tpu.memory_space<vmem>>, %arg3: memref<3x128xf32, #tpu.memory_space<vmem>>, %arg4: memref<8x128xf32, #tpu.memory_space<vmem>>) attributes {dimension_semantics = [#tpu.dimension_semantics<parallel>], iteration_bounds = array<i64: 2>, scalar_prefetch = 0 : i64, scratch_operands = 0 : i64, tpu.core_type = #tpu.core_type<tc>, window_params = [{transform_indices = @transform_0, window_bounds = array<i64: 8, 32>}, {pipeline_mode = #tpu.pipeline_mode<synchronous>, transform_indices = @transform_1, window_bounds = array<i64: 32, 128>}, {pipeline_mode = #tpu.pipeline_mode<synchronous>, transform_indices = @transform_2, window_bounds = array<i64: 3, 128>}, {transform_indices = @transform_3, window_bounds = array<i64: 8, 128>}]} {
    %c0 = arith.constant 0 : index
    %c0_0 = arith.constant 0 : index
    %0 = vector.load %arg1[%c0, %c0_0] : memref<8x32xf32, #tpu.memory_space<vmem>>, vector<8x32xf32>
    %c0_1 = arith.constant 0 : index
    %c0_2 = arith.constant 0 : index
    %1 = vector.load %arg2[%c0_1, %c0_2] : memref<32x128xf32, #tpu.memory_space<vmem>>, vector<32x128xf32>
    %c0_3 = arith.constant 0 : index
    %c0_4 = arith.constant 0 : index
    %2 = vector.load %arg3[%c0_3, %c0_4] : memref<3x128xf32, #tpu.memory_space<vmem>>, vector<3x128xf32>
    %cst = arith.constant dense<0.000000e+00> : vector<8x128xf32>
    %3 = tpu.matmul %0, %1, %cst {dimension_numbers = #tpu.dot_dimension_numbers<[1], [0], [0], [1], [0, 0, 1, 1], [], []>, precision = #tpu.contract_precision<fp32>} : vector<8x32xf32>, vector<32x128xf32>, vector<8x128xf32> -> vector<8x128xf32>
    %4 = vector.extract_strided_slice %2 {offsets = [0, 0], sizes = [1, 128], strides = [1, 1]} : vector<3x128xf32> to vector<1x128xf32>
    %5 = vector.broadcast %4 : vector<1x128xf32> to vector<8x128xf32>
    %6 = arith.addf %3, %5 : vector<8x128xf32>
    %7 = tpu.iota {dimensions = array<i32: 1>} : vector<8x128xi32>
    %c64_i32 = arith.constant 64 : i32
    %8 = vector.broadcast %c64_i32 : i32 to vector<8x128xi32>
    %9 = arith.cmpi slt, %7, %8 : vector<8x128xi32>
    %cst_5 = arith.constant dense<0.000000e+00> : vector<8xf32>
    %10 = vector.multi_reduction <add>, %6, %cst_5 [1] : vector<8x128xf32> to vector<8xf32>
    %11 = vector.shape_cast %10 : vector<8xf32> to vector<8x1xf32>
    %cst_6 = arith.constant 1.562500e-02 : f32
    %12 = vector.broadcast %cst_6 : f32 to vector<8x1xf32>
    %13 = arith.mulf %11, %12 : vector<8x1xf32>
    %14 = vector.broadcast %13 : vector<8x1xf32> to vector<8x128xf32>
    %15 = arith.subf %6, %14 : vector<8x128xf32>
    %cst_7 = arith.constant 0.000000e+00 : f32
    %16 = vector.broadcast %cst_7 : f32 to vector<8x128xf32>
    %17 = arith.select %9, %15, %16 : vector<8x128xi1>, vector<8x128xf32>
    %18 = arith.mulf %17, %17 : vector<8x128xf32>
    %cst_8 = arith.constant dense<0.000000e+00> : vector<8xf32>
    %19 = vector.multi_reduction <add>, %18, %cst_8 [1] : vector<8x128xf32> to vector<8xf32>
    %20 = vector.shape_cast %19 : vector<8xf32> to vector<8x1xf32>
    %cst_9 = arith.constant 1.562500e-02 : f32
    %21 = vector.broadcast %cst_9 : f32 to vector<8x1xf32>
    %22 = arith.mulf %20, %21 : vector<8x1xf32>
    %cst_10 = arith.constant 9.99999996E-13 : f32
    %23 = vector.broadcast %cst_10 : f32 to vector<8x1xf32>
    %24 = arith.addf %22, %23 : vector<8x1xf32>
    %25 = math.rsqrt %24 : vector<8x1xf32>
    %26 = vector.broadcast %25 : vector<8x1xf32> to vector<8x128xf32>
    %27 = arith.mulf %17, %26 : vector<8x128xf32>
    %28 = vector.extract_strided_slice %2 {offsets = [1, 0], sizes = [1, 128], strides = [1, 1]} : vector<3x128xf32> to vector<1x128xf32>
    %29 = vector.broadcast %28 : vector<1x128xf32> to vector<8x128xf32>
    %30 = arith.mulf %27, %29 : vector<8x128xf32>
    %31 = vector.extract_strided_slice %2 {offsets = [2, 0], sizes = [1, 128], strides = [1, 1]} : vector<3x128xf32> to vector<1x128xf32>
    %32 = vector.broadcast %31 : vector<1x128xf32> to vector<8x128xf32>
    %33 = arith.addf %30, %32 : vector<8x128xf32>
    %c0_11 = arith.constant 0 : index
    %c0_12 = arith.constant 0 : index
    %34 = vector.load %arg4[%c0_11, %c0_12] : memref<8x128xf32, #tpu.memory_space<vmem>>, vector<8x128xf32>
    tpu.vector_store %arg4[%c0_11, %c0_12], %33 {strides = array<i32>} : memref<8x128xf32, #tpu.memory_space<vmem>>, vector<8x128xf32>,
    return
  }
  func.func @transform_0(%arg0: i32) -> (i32, i32) {
    %c0_i32 = arith.constant 0 : i32
    %c0_i32_0 = arith.constant 0 : i32
    return %arg0, %c0_i32 : i32, i32
  }
  func.func @transform_1(%arg0: i32) -> (i32, i32) {
    %c0_i32 = arith.constant 0 : i32
    %c0_i32_0 = arith.constant 0 : i32
    %c0_i32_1 = arith.constant 0 : i32
    return %c0_i32, %c0_i32_0 : i32, i32
  }
  func.func @transform_2(%arg0: i32) -> (i32, i32) {
    %c0_i32 = arith.constant 0 : i32
    %c0_i32_0 = arith.constant 0 : i32
    %c0_i32_1 = arith.constant 0 : i32
    return %c0_i32, %c0_i32_0 : i32, i32
  }
  func.func @transform_3(%arg0: i32) -> (i32, i32) {
    %c0_i32 = arith.constant 0 : i32
    %c0_i32_0 = arith.constant 0 : i32
    return %arg0, %c0_i32 : i32, i32
  }
}

</mosaic_0001>

<llo_original>
// kernel: tpu_custom_call.1
$region0: #{tpu_custom_call.1}
  #allocation0 [shape = 'u32[]', space=smem, size = 0x4, offset = 0x4, fixed_abs, tag = 'smem constant byte address 0x4 - core index']
  #allocation1 [shape = 'u32[144,128]{1,0:T(1,128)}', space=vmem, size = 0x12000, scoped, tag = 'internal scratch']
  %s0 = inlined_call_operand.hbm [shape: f32[16,32], index: 0, kind: input, shape index: {}]
  %s1 = inlined_call_operand.hbm [shape: f32[32,128], index: 1, kind: input, shape index: {}]
  %s2 = inlined_call_operand.hbm [shape: f32[3,128], index: 2, kind: input, shape index: {}]
  %s3 = inlined_call_operand.hbm [shape: f32[16,128], index: 3, kind: output, shape index: {}]
  %s4 = sld [smem:[#allocation0]]
  $region57: #{tpu_custom_call.1} parent=0
    _
  %s6 = ssub.s32 1, %s4
  %s7 = scalar_select 0, %s6, %s4
  $region1: #{tpu_custom_call.1} parent=0
    #allocation2 [shape = 'u8[8192]{0}', space=vmem, size = 0x2000, scoped, tag = 'input window, operand 0']
    #allocation3 [shape = 's32[2]{0}', space=sflag, size = 0x8, scoped, tag = 'scoped memory for tpu_custom_call.1']
    #allocation4 [shape = 's32[2]{0}', space=sflag, size = 0x8, scoped, tag = 'scoped memory for tpu_custom_call.1']
    #allocation5 [shape = 'u8[16384]{0}', space=vmem, size = 0x4000, scoped, tag = 'input window, operand 1, single buffered']
    #allocation6 [shape = 's32[1]{0}', space=sflag, size = 0x4, scoped, tag = 'scoped memory for tpu_custom_call.1']
    #allocation7 [shape = 'u8[2048]{0}', space=vmem, size = 0x800, scoped, tag = 'input window, operand 2, single buffered']
    #allocation8 [shape = 'u8[8192]{0}', space=vmem, size = 0x2000, scoped, tag = 'output window, operand 0']
    %8 = vsyncpa [#allocation3], 0
    %s9 = scalar_lea.sflag [#allocation3], 1
    %10 = vsyncpa %s9, 0
    %11 = vsyncpa [#allocation6], 0
    %12 = vsyncpa [#allocation4], 0
    %s13 = scalar_lea.sflag [#allocation4], 1
    %14 = vsyncpa %s13, 0
    loop: start=0, step=1, limit=4
    $region2: #{tpu_custom_call.1} parent=1 // loop_pre_header
      _
    $region3: #{tpu_custom_call.1} parent=1 // loop_header
      %s16 = sphi 0, %s20
      %p17 = scmp.ge.s32.totalorder %s16, 4
      %s26 = sphi 0, %s28
      %s29 = sphi 0, %s26
      %s30 = sphi 0, %s29
      %s46 = sphi 0, %s30
      %s50 = sphi 0, %s50
      %s52 = sphi 0, %s50
      %s53 = sphi 0, %s52
      %s67 = sphi 0, %s53
      %s71 = sphi 0, %s71
      %s73 = sphi 0, %s71
      %s74 = sphi 0, %s73
      %s88 = sphi 0, %s74
      %s94 = sphi 0, %s96
      %s97 = sphi 0, %s94
      %s98 = sphi 0, %s97
      %s114 = sphi 0, %s98
    $region4: #{tpu_custom_call.1} parent=1 // loop_header_branch
      %19 = sbr.rel (%p17) target = $region8
    $region5: #{tpu_custom_call.1} parent=1 // loop_body
      %s21 = ssub.s32 %s16, 1
      %s22 = ssub.s32 %s16, 2
      %s23 = sadd.s32 %s16, 1
      %s24 = ssub.s32 %s16, %s23
      %p25 = scmp.eq.s32.totalorder %s24, 0
      %s27 = sadd.s32 %s26, 1
      %s28 = scalar_select %p25, %s26, %s27
      %p31 = pneg %p25
      %p32 = scmp.eq.s32.totalorder %s16, 1
      %p33 = por %p31, %p32
      %p34 = scmp.ne.s32.totalorder %s26, %s29
      %p35 = scmp.eq.s32.totalorder %s16, 0
      %p36 = por %p34, %p35
      %p37 = scmp.ne.s32.totalorder %s26, %s29
      %p38 = scmp.eq.s32.totalorder %s21, 1
      %p39 = por %p37, %p38
      %p40 = scmp.ne.s32.totalorder %s29, %s30
      %p41 = scmp.eq.s32.totalorder %s21, 0
      %p42 = por %p40, %p41
      %p43 = scmp.ne.s32.totalorder %s29, %s30
      %p44 = scmp.eq.s32.totalorder %s22, 1
      %p45 = por %p43, %p44
      %p47 = scmp.ne.s32.totalorder %s30, %s46
      %p48 = scmp.eq.s32.totalorder %s22, 0
      %p49 = por %p47, %p48
      %s51 = sadd.s32 %s50, 1
      %p54 = scmp.eq.s32.totalorder %s16, 1
      %p55 = scmp.ne.s32.totalorder %s50, %s52
      %p56 = scmp.eq.s32.totalorder %s16, 0
      %p57 = por %p55, %p56
      %p58 = scmp.ne.s32.totalorder %s50, %s52
      %p59 = scmp.eq.s32.totalorder %s21, 1
      %p60 = por %p58, %p59
      %p61 = scmp.ne.s32.totalorder %s52, %s53
      %p62 = scmp.eq.s32.totalorder %s21, 0
      %p63 = por %p61, %p62
      %p64 = scmp.ne.s32.totalorder %s52, %s53
      %p65 = scmp.eq.s32.totalorder %s22, 1
      %p66 = por %p64, %p65
      %p68 = scmp.ne.s32.totalorder %s53, %s67
      %p69 = scmp.eq.s32.totalorder %s22, 0
      %p70 = por %p68, %p69
      %s72 = sadd.s32 %s71, 1
      %p75 = scmp.eq.s32.totalorder %s16, 1
      %p76 = scmp.ne.s32.totalorder %s71, %s73
      %p77 = scmp.eq.s32.totalorder %s16, 0
      %p78 = por %p76, %p77
      %p79 = scmp.ne.s32.totalorder %s71, %s73
      %p80 = scmp.eq.s32.totalorder %s21, 1
      %p81 = por %p79, %p80
      %p82 = scmp.ne.s32.totalorder %s73, %s74
      %p83 = scmp.eq.s32.totalorder %s21, 0
      %p84 = por %p82, %p83
      %p85 = scmp.ne.s32.totalorder %s73, %s74
      %p86 = scmp.eq.s32.totalorder %s22, 1
      %p87 = por %p85, %p86
      %p89 = scmp.ne.s32.totalorder %s74, %s88
      %p90 = scmp.eq.s32.totalorder %s22, 0
      %p91 = por %p89, %p90
      %s92 = ssub.s32 %s16, %s23
      %p93 = scmp.eq.s32.totalorder %s92, 0
      %s95 = sadd.s32 %s94, 1
      %s96 = scalar_select %p93, %s94, %s95
      %p99 = pneg %p93
      %p100 = scmp.eq.s32.totalorder %s16, 1
      %p101 = por %p99, %p100
      %p102 = scmp.ne.s32.totalorder %s94, %s97
      %p103 = scmp.eq.s32.totalorder %s16, 0
      %p104 = por %p102, %p103
      %p105 = scmp.ne.s32.totalorder %s94, %s97
      %p106 = scmp.eq.s32.totalorder %s21, 1
      %p107 = por %p105, %p106
      %p108 = scmp.ne.s32.totalorder %s97, %s98
      %p109 = scmp.eq.s32.totalorder %s21, 0
      %p110 = por %p108, %p109
      %p111 = scmp.ne.s32.totalorder %s97, %s98
      %p112 = scmp.eq.s32.totalorder %s22, 1
      %p113 = por %p111, %p112
      %p115 = scmp.ne.s32.totalorder %s98, %s114
      %p116 = scmp.eq.s32.totalorder %s22, 0
      %p117 = por %p115, %p116
      %p118 = scmp.le.s32.totalorder 1, %s16
      %p119 = scmp.lt.s32.totalorder %s16, 3
      %p120 = pnand %p118, %p119
      %p121 = pneg %p120
      // Predicated region
      $region9: #{tpu_custom_call.1} parent=5 // pred_check
        _
      $region10: #{tpu_custom_call.1} parent=5 // pred_check_branch
        %123 = sbr.rel (%p120) target = $region12
      $region11: #{tpu_custom_call.1} parent=5 // pred_region
        %s124 = ssub.s32 %s16, 1
        // Predicated region
        $region13: #{tpu_custom_call.1} parent=11 // pred_check
          %p125 = pneg %p63
        $region14: #{tpu_custom_call.1} parent=11 // pred_check_branch
          %127 = sbr.rel (%p125) target = $region16
        $region15: #{tpu_custom_call.1} parent=11 // pred_region
          %s129 = ssub.s32 512, 512
          %130 = vsyncadd [#allocation6], %s129
          %s131 = sshll.u32 [#allocation5], 4
          %s132 = int_to_ptr.vmem [resolvable:$true] %s131
          %137 = dma.hbm_to_vmem [thread:$0]  %s1, 512, %s132, [#allocation6], 128, 128, 8
        $region16: #{tpu_custom_call.1} parent=11 // pred_fallthru
          _
        // Predicated region
        $region17: #{tpu_custom_call.1} parent=11 // pred_check
          %p138 = pneg %p84
        $region18: #{tpu_custom_call.1} parent=11 // pred_check_branch
          %140 = sbr.rel (%p138) target = $region20
        $region19: #{tpu_custom_call.1} parent=11 // pred_region
          %s142 = ssub.s32 64, 64
          %143 = vsyncadd [#allocation6], %s142
          %s145 = sshll.u32 [#allocation7], 4
          %s146 = int_to_ptr.vmem [resolvable:$true] %s145
          %148 = dma.hbm_to_vmem [thread:$0]  %s2, 64, %s146, [#allocation6]
        $region20: #{tpu_custom_call.1} parent=11 // pred_fallthru
          _
      $region12: #{tpu_custom_call.1} parent=5 // pred_fallthru
        _
      %p149 = scmp.lt.s32.totalorder %s16, 2
      // Predicated region
      $region21: #{tpu_custom_call.1} parent=5 // pred_check
        %p150 = pneg %p149
      $region22: #{tpu_custom_call.1} parent=5 // pred_check_branch
        %152 = sbr.rel (%p150) target = $region24
      $region23: #{tpu_custom_call.1} parent=5 // pred_region
        // Predicated region
        $region25: #{tpu_custom_call.1} parent=23 // pred_check
          %p153 = pneg %p36
        $region26: #{tpu_custom_call.1} parent=23 // pred_check_branch
          %155 = sbr.rel (%p153) target = $region28
        $region27: #{tpu_custom_call.1} parent=23 // pred_region
          %s156 = sand.u32 %s26, 1
          %s157 = scalar_lea.sflag [#allocation3], %s156
          %s158 = sand.u32 %s26, 1
          %s159 = smul.addr %s158, 8
          %s160 = scalar_lea.vmem [#allocation2], %s159
          %s162 = ssub.s32 128, 128
          %163 = vsyncadd %s157, %s162
          %s164 = smul.addr %s16, 128
          %s165 = scalar_lea.hbm %s0, %s164
          %s167 = sshll.u32 %s160, 4
          %s168 = int_to_ptr.vmem [resolvable:$true] %s167
          %170 = dma.hbm_to_vmem [thread:$0]  %s165, 128, %s168, %s157
        $region28: #{tpu_custom_call.1} parent=23 // pred_fallthru
          _
      $region24: #{tpu_custom_call.1} parent=5 // pred_fallthru
        _
      %p171 = scmp.le.s32.totalorder 1, %s16
      %p172 = scmp.lt.s32.totalorder %s16, 3
      %p173 = pnand %p171, %p172
      %p174 = pneg %p173
      // Predicated region
      $region29: #{tpu_custom_call.1} parent=5 // pred_check
        _
      $region30: #{tpu_custom_call.1} parent=5 // pred_check_branch
        %176 = sbr.rel (%p173) target = $region32
      $region31: #{tpu_custom_call.1} parent=5 // pred_region
        %s177 = ssub.s32 %s16, 1
        %s178 = sand.u32 %s29, 1
        %s179 = scalar_lea.sflag [#allocation3], %s178
        %s180 = sand.u32 %s29, 1
        %s181 = smul.addr %s180, 8
        %s182 = scalar_lea.vmem [#allocation2], %s181
        // Predicated region
        $region33: #{tpu_custom_call.1} parent=31 // pred_check
          %p183 = pneg %p42
        $region34: #{tpu_custom_call.1} parent=31 // pred_check_branch
          %185 = sbr.rel (%p183) target = $region36
        $region35: #{tpu_custom_call.1} parent=31 // pred_region
          %186 = dma.done %s179, 128
        $region36: #{tpu_custom_call.1} parent=31 // pred_fallthru
          _
        // Predicated region
        $region37: #{tpu_custom_call.1} parent=31 // pred_check
          %p187 = pneg %p63
        $region38: #{tpu_custom_call.1} parent=31 // pred_check_branch
          %189 = sbr.rel (%p187) target = $region40
        $region39: #{tpu_custom_call.1} parent=31 // pred_region
          %190 = dma.done [#allocation6], 512
        $region40: #{tpu_custom_call.1} parent=31 // pred_fallthru
          _
        // Predicated region
        $region41: #{tpu_custom_call.1} parent=31 // pred_check
          %p191 = pneg %p84
        $region42: #{tpu_custom_call.1} parent=31 // pred_check_branch
          %193 = sbr.rel (%p191) target = $region44
        $region43: #{tpu_custom_call.1} parent=31 // pred_region
          %194 = dma.done [#allocation6], 64
        $region44: #{tpu_custom_call.1} parent=31 // pred_fallthru
          _
        %s195 = sand.u32 %s29, 1
        %s196 = scalar_lea.sflag [#allocation3], %s195
        %s197 = sand.u32 %s29, 1
        %s198 = smul.addr %s197, 8
        %s199 = scalar_lea.vmem [#allocation2], %s198
        %p200 = pneg %p42
        %p201 = pneg %p39
        %p202 = pneg %p63
        %p203 = pneg %p60
        %p204 = pneg %p84
        %p205 = pneg %p81
        %p206 = pneg %p110
        %p207 = pneg %p107
        %s208 = sand.u32 %s97, 1
        %s209 = scalar_lea.sflag [#allocation4], %s208
        %s210 = sand.u32 %s97, 1
        %s211 = smul.addr %s210, 8
        %s212 = scalar_lea.vmem [#allocation8], %s211
        %v213 = vld [vmem:[%s182] sm:$0xff]
        %v214 = vld [vmem:[#allocation5] sm:$0xff]
        %v215 = vld [vmem:[#allocation5 + $0x8] sm:$0xff]
        %v216 = vld [vmem:[#allocation5 + $0x10] sm:$0xff]
        %v217 = vld [vmem:[#allocation5 + $0x18] sm:$0xff]
        %v218 = vld [vmem:[#allocation7] sm:$0x7]
        %v219 = vlaneseq
        %v220 = vshrl.u32 %v219, 7
        %v221 = vsub.s32 0, %v220
        %v222 = vrot.slane %v218, %v221
        %vm223 = vcmask 261120
        %v225 = vsel %vm223, %v213, 0
        %227 = vmatprep.subr.mxu0 0.0
        %228 = vmatpush1.msra.mxu0 0.0
        %229 = vmatprep.subr.mxu0 0.0
        %230 = vmatpush1.msra.mxu0 0.0
        %231 = vmatprep.subr.mxu0 0.0
        %232 = vmatpush1.msra.mxu0 0.0
        %233 = vmatprep.subr.mxu0 0.0
        %234 = vmatpush1.msra.mxu0 0.0
        %235 = vmatprep.subr.mxu0 0.0
        %236 = vmatpush1.msra.mxu0 0.0
        %237 = vmatprep.subr.mxu0 0.0
        %238 = vmatpush1.msra.mxu0 0.0
        %239 = vmatprep.subr.mxu0 0.0
        %240 = vmatpush1.msra.mxu0 0.0
        %241 = vmatprep.subr.mxu0 0.0
        %242 = vmatpush1.msra.mxu0 0.0
        %243 = vmatprep.subr.mxu0 0.0
        %244 = vmatpush1.msra.mxu0 0.0
        %245 = vmatprep.subr.mxu0 0.0
        %246 = vmatpush1.msra.mxu0 0.0
        %247 = vmatprep.subr.mxu0 0.0
        %248 = vmatpush1.msra.mxu0 0.0
        %249 = vmatprep.subr.mxu0 0.0
        %250 = vmatpush1.msra.mxu0 0.0
        %251 = vmatprep.subr.mxu0 0.0
        %v252 = vand.u32 %v217, 4294901760
        %253 = vmatpush1.msra.mxu0 %v252
        %254 = vmatprep.subr.mxu0 0.0
        %v255 = vand.u32 %v216, 4294901760
        %256 = vmatpush1.msra.mxu0 %v255
        %257 = vmatprep.subr.mxu0 0.0
        %v258 = vand.u32 %v215, 4294901760
        %259 = vmatpush1.msra.mxu0 %v258
        %260 = vmatprep.subr.mxu0 0.0
        %v261 = vand.u32 %v214, 4294901760
        %262 = vmatpush1.msra.mxu0 %v261
        %263 = vmatprep.subr.mxu0 0.0
        %264 = vmatpush2.msra.mxu0 0.0
        %265 = vmatprep.subr.mxu0 0.0
        %266 = vmatpush2.msra.mxu0 0.0
        %267 = vmatprep.subr.mxu0 0.0
        %268 = vmatpush2.msra.mxu0 0.0
        %269 = vmatprep.subr.mxu0 0.0
        %270 = vmatpush2.msra.mxu0 0.0
        %271 = vmatprep.subr.mxu0 0.0
        %272 = vmatpush2.msra.mxu0 0.0
        %273 = vmatprep.subr.mxu0 0.0
        %274 = vmatpush2.msra.mxu0 0.0
        %275 = vmatprep.subr.mxu0 0.0
        %276 = vmatpush2.msra.mxu0 0.0
        %277 = vmatprep.subr.mxu0 0.0
        %278 = vmatpush2.msra.mxu0 0.0
        %279 = vmatprep.subr.mxu0 0.0
        %280 = vmatpush2.msra.mxu0 0.0
        %281 = vmatprep.subr.mxu0 0.0
        %282 = vmatpush2.msra.mxu0 0.0
        %283 = vmatprep.subr.mxu0 0.0
        %284 = vmatpush2.msra.mxu0 0.0
        %285 = vmatprep.subr.mxu0 0.0
        %286 = vmatpush2.msra.mxu0 0.0
        %287 = vmatprep.subr.mxu0 0.0
        %288 = vmatpush2.msra.mxu0 0.0
        %289 = vmatprep.subr.mxu0 0.0
        %290 = vmatpush2.msra.mxu0 0.0
        %291 = vmatprep.subr.mxu0 0.0
        %292 = vmatpush2.msra.mxu0 0.0
        %293 = vmatprep.subr.mxu0 0.0
        %294 = vmatpush2.msra.mxu0 0.0
        %295 = vmatprep.mubr.f32.mxu0 0.0
        %v296 = vand.u32 %v225, 4294901760
        %v297 = vsub.f32 %v225, %v296
        %v298 = vand.u32 %v297, 4294901760
        %v299 = vsub.f32 %v297, %v298
        %v300 = vand.u32 %v299, 4294901760
        %301 = vmatmul.mubr.f32.gmra.mxu0 %v300
        %v302 = vpop.f32.mrf.mxu0
        %v303 = vadd.f32 %v222, %v302
        %v304 = vpop.f32.mrf.mxu0
        %305 = vdwg.mxu0
        %306 = vmatprep.subr.mxu0 0.0
        %307 = vmatpush1.msra.mxu0 0.0
        %308 = vmatprep.subr.mxu0 0.0
        %309 = vmatpush1.msra.mxu0 0.0
        %310 = vmatprep.subr.mxu0 0.0
        %311 = vmatpush1.msra.mxu0 0.0
        %312 = vmatprep.subr.mxu0 0.0
        %313 = vmatpush1.msra.mxu0 0.0
        %314 = vmatprep.subr.mxu0 0.0
        %315 = vmatpush1.msra.mxu0 0.0
        %316 = vmatprep.subr.mxu0 0.0
        %317 = vmatpush1.msra.mxu0 0.0
        %318 = vmatprep.subr.mxu0 0.0
        %319 = vmatpush1.msra.mxu0 0.0
        %320 = vmatprep.subr.mxu0 0.0
        %321 = vmatpush1.msra.mxu0 0.0
        %322 = vmatprep.subr.mxu0 0.0
        %323 = vmatpush1.msra.mxu0 0.0
        %324 = vmatprep.subr.mxu0 0.0
        %325 = vmatpush1.msra.mxu0 0.0
        %326 = vmatprep.subr.mxu0 0.0
        %327 = vmatpush1.msra.mxu0 0.0
        %328 = vmatprep.subr.mxu0 0.0
        %329 = vmatpush1.msra.mxu0 0.0
        %330 = vmatprep.subr.mxu0 0.0
        %v331 = vand.u32 %v217, 4294901760
        %v332 = vsub.f32 %v217, %v331
        %v333 = vand.u32 %v332, 4294901760
        %v334 = vsub.f32 %v332, %v333
        %v335 = vand.u32 %v334, 4294901760
        %336 = vmatpush1.msra.mxu0 %v335
        %337 = vmatprep.subr.mxu0 0.0
        %v338 = vand.u32 %v216, 4294901760
        %v339 = vsub.f32 %v216, %v338
        %v340 = vand.u32 %v339, 4294901760
        %v341 = vsub.f32 %v339, %v340
        %v342 = vand.u32 %v341, 4294901760
        %343 = vmatpush1.msra.mxu0 %v342
        %344 = vmatprep.subr.mxu0 0.0
        %v345 = vand.u32 %v215, 4294901760
        %v346 = vsub.f32 %v215, %v345
        %v347 = vand.u32 %v346, 4294901760
        %v348 = vsub.f32 %v346, %v347
        %v349 = vand.u32 %v348, 4294901760
        %350 = vmatpush1.msra.mxu0 %v349
        %351 = vmatprep.subr.mxu0 0.0
        %v352 = vand.u32 %v214, 4294901760
        %v353 = vsub.f32 %v214, %v352
        %v354 = vand.u32 %v353, 4294901760
        %v355 = vsub.f32 %v353, %v354
        %v356 = vand.u32 %v355, 4294901760
        %357 = vmatpush1.msra.mxu0 %v356
        %358 = vmatprep.subr.mxu0 0.0
        %359 = vmatpush2.msra.mxu0 0.0
        %360 = vmatprep.subr.mxu0 0.0
        %361 = vmatpush2.msra.mxu0 0.0
        %362 = vmatprep.subr.mxu0 0.0
        %363 = vmatpush2.msra.mxu0 0.0
        %364 = vmatprep.subr.mxu0 0.0
        %365 = vmatpush2.msra.mxu0 0.0
        %366 = vmatprep.subr.mxu0 0.0
        %367 = vmatpush2.msra.mxu0 0.0
        %368 = vmatprep.subr.mxu0 0.0
        %369 = vmatpush2.msra.mxu0 0.0
        %370 = vmatprep.subr.mxu0 0.0
        %371 = vmatpush2.msra.mxu0 0.0
        %372 = vmatprep.subr.mxu0 0.0
        %373 = vmatpush2.msra.mxu0 0.0
        %374 = vmatprep.subr.mxu0 0.0
        %375 = vmatpush2.msra.mxu0 0.0
        %376 = vmatprep.subr.mxu0 0.0
        %377 = vmatpush2.msra.mxu0 0.0
        %378 = vmatprep.subr.mxu0 0.0
        %379 = vmatpush2.msra.mxu0 0.0
        %380 = vmatprep.subr.mxu0 0.0
        %381 = vmatpush2.msra.mxu0 0.0
        %382 = vmatprep.subr.mxu0 0.0
        %383 = vmatpush2.msra.mxu0 0.0
        %384 = vmatprep.subr.mxu0 0.0
        %385 = vmatpush2.msra.mxu0 0.0
        %386 = vmatprep.subr.mxu0 0.0
        %387 = vmatpush2.msra.mxu0 0.0
        %388 = vmatprep.subr.mxu0 0.0
        %389 = vmatpush2.msra.mxu0 0.0
        %390 = vmatprep.mubr.f32.mxu0 0.0
        %v391 = vand.u32 %v225, 4294901760
        %392 = vmatmul.mubr.f32.gmra.mxu0 %v391
        %v393 = vpop.f32.mrf.mxu0
        %v394 = vadd.f32 %v303, %v393
        %v395 = vpop.f32.mrf.mxu0
        %396 = vdwg.mxu0
        %397 = vmatprep.subr.mxu0 0.0
        %398 = vmatpush1.msra.mxu0 0.0
        %399 = vmatprep.subr.mxu0 0.0
        %400 = vmatpush1.msra.mxu0 0.0
        %401 = vmatprep.subr.mxu0 0.0
        %402 = vmatpush1.msra.mxu0 0.0
        %403 = vmatprep.subr.mxu0 0.0
        %404 = vmatpush1.msra.mxu0 0.0
        %405 = vmatprep.subr.mxu0 0.0
        %406 = vmatpush1.msra.mxu0 0.0
        %407 = vmatprep.subr.mxu0 0.0
        %408 = vmatpush1.msra.mxu0 0.0
        %409 = vmatprep.subr.mxu0 0.0
        %410 = vmatpush1.msra.mxu0 0.0
        %411 = vmatprep.subr.mxu0 0.0
        %412 = vmatpush1.msra.mxu0 0.0
        %413 = vmatprep.subr.mxu0 0.0
        %414 = vmatpush1.msra.mxu0 0.0
        %415 = vmatprep.subr.mxu0 0.0
        %416 = vmatpush1.msra.mxu0 0.0
        %417 = vmatprep.subr.mxu0 0.0
        %418 = vmatpush1.msra.mxu0 0.0
        %419 = vmatprep.subr.mxu0 0.0
        %420 = vmatpush1.msra.mxu0 0.0
        %421 = vmatprep.subr.mxu0 0.0
        %v422 = vand.u32 %v217, 4294901760
        %v423 = vsub.f32 %v217, %v422
        %424 = vmatpush1.msra.mxu0 %v423
        %425 = vmatprep.subr.mxu0 0.0
        %v426 = vand.u32 %v216, 4294901760
        %v427 = vsub.f32 %v216, %v426
        %428 = vmatpush1.msra.mxu0 %v427
        %429 = vmatprep.subr.mxu0 0.0
        %v430 = vand.u32 %v215, 4294901760
        %v431 = vsub.f32 %v215, %v430
        %432 = vmatpush1.msra.mxu0 %v431
        %433 = vmatprep.subr.mxu0 0.0
        %v434 = vand.u32 %v214, 4294901760
        %v435 = vsub.f32 %v214, %v434
        %436 = vmatpush1.msra.mxu0 %v435
        %437 = vmatprep.subr.mxu0 0.0
        %438 = vmatpush2.msra.mxu0 0.0
        %439 = vmatprep.subr.mxu0 0.0
        %440 = vmatpush2.msra.mxu0 0.0
        %441 = vmatprep.subr.mxu0 0.0
        %442 = vmatpush2.msra.mxu0 0.0
        %443 = vmatprep.subr.mxu0 0.0
        %444 = vmatpush2.msra.mxu0 0.0
        %445 = vmatprep.subr.mxu0 0.0
        %446 = vmatpush2.msra.mxu0 0.0
        %447 = vmatprep.subr.mxu0 0.0
        %448 = vmatpush2.msra.mxu0 0.0
        %449 = vmatprep.subr.mxu0 0.0
        %450 = vmatpush2.msra.mxu0 0.0
        %451 = vmatprep.subr.mxu0 0.0
        %452 = vmatpush2.msra.mxu0 0.0
        %453 = vmatprep.subr.mxu0 0.0
        %454 = vmatpush2.msra.mxu0 0.0
        %455 = vmatprep.subr.mxu0 0.0
        %456 = vmatpush2.msra.mxu0 0.0
        %457 = vmatprep.subr.mxu0 0.0
        %458 = vmatpush2.msra.mxu0 0.0
        %459 = vmatprep.subr.mxu0 0.0
        %460 = vmatpush2.msra.mxu0 0.0
        %461 = vmatprep.subr.mxu0 0.0
        %462 = vmatpush2.msra.mxu0 0.0
        %463 = vmatprep.subr.mxu0 0.0
        %464 = vmatpush2.msra.mxu0 0.0
        %465 = vmatprep.subr.mxu0 0.0
        %466 = vmatpush2.msra.mxu0 0.0
        %467 = vmatprep.subr.mxu0 0.0
        %468 = vmatpush2.msra.mxu0 0.0
        %469 = vmatprep.mubr.f32.mxu0 0.0
        %v470 = vand.u32 %v225, 4294901760
        %v471 = vsub.f32 %v225, %v470
        %472 = vmatmul.mubr.f32.gmra.mxu0 %v471
        %v473 = vpop.f32.mrf.mxu0
        %v474 = vadd.f32 %v394, %v473
        %v475 = vpop.f32.mrf.mxu0
        %476 = vdwg.mxu0
        %477 = vmatprep.subr.mxu0 0.0
        %478 = vmatpush1.msra.mxu0 0.0
        %479 = vmatprep.subr.mxu0 0.0
        %480 = vmatpush1.msra.mxu0 0.0
        %481 = vmatprep.subr.mxu0 0.0
        %482 = vmatpush1.msra.mxu0 0.0
        %483 = vmatprep.subr.mxu0 0.0
        %484 = vmatpush1.msra.mxu0 0.0
        %485 = vmatprep.subr.mxu0 0.0
        %486 = vmatpush1.msra.mxu0 0.0
        %487 = vmatprep.subr.mxu0 0.0
        %488 = vmatpush1.msra.mxu0 0.0
        %489 = vmatprep.subr.mxu0 0.0
        %490 = vmatpush1.msra.mxu0 0.0
        %491 = vmatprep.subr.mxu0 0.0
        %492 = vmatpush1.msra.mxu0 0.0
        %493 = vmatprep.subr.mxu0 0.0
        %494 = vmatpush1.msra.mxu0 0.0
        %495 = vmatprep.subr.mxu0 0.0
        %496 = vmatpush1.msra.mxu0 0.0
        %497 = vmatprep.subr.mxu0 0.0
        %498 = vmatpush1.msra.mxu0 0.0
        %499 = vmatprep.subr.mxu0 0.0
        %500 = vmatpush1.msra.mxu0 0.0
        %501 = vmatprep.subr.mxu0 0.0
        %v502 = vand.u32 %v217, 4294901760
        %503 = vmatpush1.msra.mxu0 %v502
        %504 = vmatprep.subr.mxu0 0.0
        %v505 = vand.u32 %v216, 4294901760
        %506 = vmatpush1.msra.mxu0 %v505
        %507 = vmatprep.subr.mxu0 0.0
        %v508 = vand.u32 %v215, 4294901760
        %509 = vmatpush1.msra.mxu0 %v508
        %510 = vmatprep.subr.mxu0 0.0
        %v511 = vand.u32 %v214, 4294901760
        %512 = vmatpush1.msra.mxu0 %v511
        %513 = vmatprep.subr.mxu0 0.0
        %514 = vmatpush2.msra.mxu0 0.0
        %515 = vmatprep.subr.mxu0 0.0
        %516 = vmatpush2.msra.mxu0 0.0
        %517 = vmatprep.subr.mxu0 0.0
        %518 = vmatpush2.msra.mxu0 0.0
        %519 = vmatprep.subr.mxu0 0.0
        %520 = vmatpush2.msra.mxu0 0.0
        %521 = vmatprep.subr.mxu0 0.0
        %522 = vmatpush2.msra.mxu0 0.0
        %523 = vmatprep.subr.mxu0 0.0
        %524 = vmatpush2.msra.mxu0 0.0
        %525 = vmatprep.subr.mxu0 0.0
        %526 = vmatpush2.msra.mxu0 0.0
        %527 = vmatprep.subr.mxu0 0.0
        %528 = vmatpush2.msra.mxu0 0.0
        %529 = vmatprep.subr.mxu0 0.0
        %530 = vmatpush2.msra.mxu0 0.0
        %531 = vmatprep.subr.mxu0 0.0
        %532 = vmatpush2.msra.mxu0 0.0
        %533 = vmatprep.subr.mxu0 0.0
        %534 = vmatpush2.msra.mxu0 0.0
        %535 = vmatprep.subr.mxu0 0.0
        %536 = vmatpush2.msra.mxu0 0.0
        %537 = vmatprep.subr.mxu0 0.0
        %538 = vmatpush2.msra.mxu0 0.0
        %539 = vmatprep.subr.mxu0 0.0
        %540 = vmatpush2.msra.mxu0 0.0
        %541 = vmatprep.subr.mxu0 0.0
        %542 = vmatpush2.msra.mxu0 0.0
        %543 = vmatprep.subr.mxu0 0.0
        %544 = vmatpush2.msra.mxu0 0.0
        %545 = vmatprep.mubr.f32.mxu0 0.0
        %v546 = vand.u32 %v225, 4294901760
        %v547 = vsub.f32 %v225, %v546
        %v548 = vand.u32 %v547, 4294901760
        %549 = vmatmul.mubr.f32.gmra.mxu0 %v548
        %v550 = vpop.f32.mrf.mxu0
        %v551 = vadd.f32 %v474, %v550
        %v552 = vpop.f32.mrf.mxu0
        %553 = vdwg.mxu0
        %554 = vmatprep.subr.mxu0 0.0
        %555 = vmatpush1.msra.mxu0 0.0
        %556 = vmatprep.subr.mxu0 0.0
        %557 = vmatpush1.msra.mxu0 0.0
        %558 = vmatprep.subr.mxu0 0.0
        %559 = vmatpush1.msra.mxu0 0.0
        %560 = vmatprep.subr.mxu0 0.0
        %561 = vmatpush1.msra.mxu0 0.0
        %562 = vmatprep.subr.mxu0 0.0
        %563 = vmatpush1.msra.mxu0 0.0
        %564 = vmatprep.subr.mxu0 0.0
        %565 = vmatpush1.msra.mxu0 0.0
        %566 = vmatprep.subr.mxu0 0.0
        %567 = vmatpush1.msra.mxu0 0.0
        %568 = vmatprep.subr.mxu0 0.0
        %569 = vmatpush1.msra.mxu0 0.0
        %570 = vmatprep.subr.mxu0 0.0
        %571 = vmatpush1.msra.mxu0 0.0
        %572 = vmatprep.subr.mxu0 0.0
        %573 = vmatpush1.msra.mxu0 0.0
        %574 = vmatprep.subr.mxu0 0.0
        %575 = vmatpush1.msra.mxu0 0.0
        %576 = vmatprep.subr.mxu0 0.0
        %577 = vmatpush1.msra.mxu0 0.0
        %578 = vmatprep.subr.mxu0 0.0
        %v579 = vand.u32 %v217, 4294901760
        %v580 = vsub.f32 %v217, %v579
        %v581 = vand.u32 %v580, 4294901760
        %582 = vmatpush1.msra.mxu0 %v581
        %583 = vmatprep.subr.mxu0 0.0
        %v584 = vand.u32 %v216, 4294901760
        %v585 = vsub.f32 %v216, %v584
        %v586 = vand.u32 %v585, 4294901760
        %587 = vmatpush1.msra.mxu0 %v586
        %588 = vmatprep.subr.mxu0 0.0
        %v589 = vand.u32 %v215, 4294901760
        %v590 = vsub.f32 %v215, %v589
        %v591 = vand.u32 %v590, 4294901760
        %592 = vmatpush1.msra.mxu0 %v591
        %593 = vmatprep.subr.mxu0 0.0
        %v594 = vand.u32 %v214, 4294901760
        %v595 = vsub.f32 %v214, %v594
        %v596 = vand.u32 %v595, 4294901760
        %597 = vmatpush1.msra.mxu0 %v596
        %598 = vmatprep.subr.mxu0 0.0
        %599 = vmatpush2.msra.mxu0 0.0
        %600 = vmatprep.subr.mxu0 0.0
        %601 = vmatpush2.msra.mxu0 0.0
        %602 = vmatprep.subr.mxu0 0.0
        %603 = vmatpush2.msra.mxu0 0.0
        %604 = vmatprep.subr.mxu0 0.0
        %605 = vmatpush2.msra.mxu0 0.0
        %606 = vmatprep.subr.mxu0 0.0
        %607 = vmatpush2.msra.mxu0 0.0
        %608 = vmatprep.subr.mxu0 0.0
        %609 = vmatpush2.msra.mxu0 0.0
        %610 = vmatprep.subr.mxu0 0.0
        %611 = vmatpush2.msra.mxu0 0.0
        %612 = vmatprep.subr.mxu0 0.0
        %613 = vmatpush2.msra.mxu0 0.0
        %614 = vmatprep.subr.mxu0 0.0
        %615 = vmatpush2.msra.mxu0 0.0
        %616 = vmatprep.subr.mxu0 0.0
        %617 = vmatpush2.msra.mxu0 0.0
        %618 = vmatprep.subr.mxu0 0.0
        %619 = vmatpush2.msra.mxu0 0.0
        %620 = vmatprep.subr.mxu0 0.0
        %621 = vmatpush2.msra.mxu0 0.0
        %622 = vmatprep.subr.mxu0 0.0
        %623 = vmatpush2.msra.mxu0 0.0
        %624 = vmatprep.subr.mxu0 0.0
        %625 = vmatpush2.msra.mxu0 0.0
        %626 = vmatprep.subr.mxu0 0.0
        %627 = vmatpush2.msra.mxu0 0.0
        %628 = vmatprep.subr.mxu0 0.0
        %629 = vmatpush2.msra.mxu0 0.0
        %630 = vmatprep.mubr.f32.mxu0 0.0
        %v631 = vand.u32 %v225, 4294901760
        %632 = vmatmul.mubr.f32.gmra.mxu0 %v631
        %v633 = vpop.f32.mrf.mxu0
        %v634 = vadd.f32 %v551, %v633
        %v635 = vpop.f32.mrf.mxu0
        %636 = vdwg.mxu0
        %637 = vmatprep.subr.mxu0 0.0
        %638 = vmatpush1.msra.mxu0 0.0
        %639 = vmatprep.subr.mxu0 0.0
        %640 = vmatpush1.msra.mxu0 0.0
        %641 = vmatprep.subr.mxu0 0.0
        %642 = vmatpush1.msra.mxu0 0.0
        %643 = vmatprep.subr.mxu0 0.0
        %644 = vmatpush1.msra.mxu0 0.0
        %645 = vmatprep.subr.mxu0 0.0
        %646 = vmatpush1.msra.mxu0 0.0
        %647 = vmatprep.subr.mxu0 0.0
        %648 = vmatpush1.msra.mxu0 0.0
        %649 = vmatprep.subr.mxu0 0.0
        %650 = vmatpush1.msra.mxu0 0.0
        %651 = vmatprep.subr.mxu0 0.0
        %652 = vmatpush1.msra.mxu0 0.0
        %653 = vmatprep.subr.mxu0 0.0
        %654 = vmatpush1.msra.mxu0 0.0
        %655 = vmatprep.subr.mxu0 0.0
        %656 = vmatpush1.msra.mxu0 0.0
        %657 = vmatprep.subr.mxu0 0.0
        %658 = vmatpush1.msra.mxu0 0.0
        %659 = vmatprep.subr.mxu0 0.0
        %660 = vmatpush1.msra.mxu0 0.0
        %661 = vmatprep.subr.mxu0 0.0
        %v662 = vand.u32 %v217, 4294901760
        %663 = vmatpush1.msra.mxu0 %v662
        %664 = vmatprep.subr.mxu0 0.0
        %v665 = vand.u32 %v216, 4294901760
        %666 = vmatpush1.msra.mxu0 %v665
        %667 = vmatprep.subr.mxu0 0.0
        %v668 = vand.u32 %v215, 4294901760
        %669 = vmatpush1.msra.mxu0 %v668
        %670 = vmatprep.subr.mxu0 0.0
        %v671 = vand.u32 %v214, 4294901760
        %672 = vmatpush1.msra.mxu0 %v671
        %673 = vmatprep.subr.mxu0 0.0
        %674 = vmatpush2.msra.mxu0 0.0
        %675 = vmatprep.subr.mxu0 0.0
        %676 = vmatpush2.msra.mxu0 0.0
        %677 = vmatprep.subr.mxu0 0.0
        %678 = vmatpush2.msra.mxu0 0.0
        %679 = vmatprep.subr.mxu0 0.0
        %680 = vmatpush2.msra.mxu0 0.0
        %681 = vmatprep.subr.mxu0 0.0
        %682 = vmatpush2.msra.mxu0 0.0
        %683 = vmatprep.subr.mxu0 0.0
        %684 = vmatpush2.msra.mxu0 0.0
        %685 = vmatprep.subr.mxu0 0.0
        %686 = vmatpush2.msra.mxu0 0.0
        %687 = vmatprep.subr.mxu0 0.0
        %688 = vmatpush2.msra.mxu0 0.0
        %689 = vmatprep.subr.mxu0 0.0
        %690 = vmatpush2.msra.mxu0 0.0
        %691 = vmatprep.subr.mxu0 0.0
        %692 = vmatpush2.msra.mxu0 0.0
        %693 = vmatprep.subr.mxu0 0.0
        %694 = vmatpush2.msra.mxu0 0.0
        %695 = vmatprep.subr.mxu0 0.0
        %696 = vmatpush2.msra.mxu0 0.0
        %697 = vmatprep.subr.mxu0 0.0
        %698 = vmatpush2.msra.mxu0 0.0
        %699 = vmatprep.subr.mxu0 0.0
        %700 = vmatpush2.msra.mxu0 0.0
        %701 = vmatprep.subr.mxu0 0.0
        %702 = vmatpush2.msra.mxu0 0.0
        %703 = vmatprep.subr.mxu0 0.0
        %704 = vmatpush2.msra.mxu0 0.0
        %705 = vmatprep.mubr.f32.mxu0 0.0
        %v706 = vand.u32 %v225, 4294901760
        %707 = vmatmul.mubr.f32.gmra.mxu0 %v706
        %v708 = vpop.f32.mrf.mxu0
        %v709 = vadd.f32 %v634, %v708
        %v710 = vpop.f32.mrf.mxu0
        %711 = vdwg.mxu0
        %v712 = vlaneseq
        %v713 = vand.u32 %v712, 127
        %vm714 = vcmp.lt.s32.totalorder %v713, 64
        %715 = vadd.xlane.f32.xlu0 %v709
        %v716 = vpop.xlane.xlu0 %715
        %v717 = vmul.f32 %v716, 0.015625
        %v718 = vsub.f32 %v709, %v717
        %v719 = vsel %vm714, %v718, 0.0
        %v720 = vmul.f32 %v719, %v719
        %721 = vadd.xlane.f32.xlu0 %v720
        %v722 = vpop.xlane.xlu0 %721
        %v723 = vmul.f32 %v722, 0.015625
        %v724 = vadd.f32 %v723, 1e-12
        %v725 = vrsqrt.pop %v724
        %v726 = vmul.f32 %v719, %v725
        %v727 = vlaneseq
        %v728 = vshrl.u32 %v727, 7
        %v729 = vsub.s32 1, %v728
        %v730 = vrot.slane %v218, %v729
        %v731 = vmul.f32 %v726, %v730
        %v732 = vlaneseq
        %v733 = vshrl.u32 %v732, 7
        %v734 = vsub.s32 2, %v733
        %v735 = vrot.slane %v218, %v734
        %v736 = vadd.f32 %v731, %v735
        %737 = vst [vmem:[%s212] sm:$0xff] %v736
        %s738 = sand.u32 %s97, 1
        %s739 = scalar_lea.sflag [#allocation4], %s738
        %s740 = sand.u32 %s97, 1
        %s741 = smul.addr %s740, 8
        %s742 = scalar_lea.vmem [#allocation8], %s741
        // Predicated region
        $region45: #{tpu_custom_call.1} parent=31 // pred_check
          %p743 = pneg %p107
        $region46: #{tpu_custom_call.1} parent=31 // pred_check_branch
          %745 = sbr.rel (%p743) target = $region48
        $region47: #{tpu_custom_call.1} parent=31 // pred_region
          %s747 = ssub.s32 128, 128
          %748 = vsyncadd %s739, %s747
          %s749 = smul.addr %s21, 128
          %s750 = scalar_lea.hbm %s3, %s749
          %s752 = sshll.u32 %s742, 4
          %s753 = int_to_ptr.vmem [resolvable:$true] %s752
          %755 = dma.vmem_to_hbm [thread:$0]  %s753, 128, %s750, %s739
        $region48: #{tpu_custom_call.1} parent=31 // pred_fallthru
          _
      $region32: #{tpu_custom_call.1} parent=5 // pred_fallthru
        _
      %p756 = scmp.le.s32.totalorder 2, %s16
      // Predicated region
      $region49: #{tpu_custom_call.1} parent=5 // pred_check
        %p757 = pneg %p756
      $region50: #{tpu_custom_call.1} parent=5 // pred_check_branch
        %759 = sbr.rel (%p757) target = $region52
      $region51: #{tpu_custom_call.1} parent=5 // pred_region
        %s760 = ssub.s32 %s16, 2
        // Predicated region
        $region53: #{tpu_custom_call.1} parent=51 // pred_check
          %p761 = pneg %p113
        $region54: #{tpu_custom_call.1} parent=51 // pred_check_branch
          %763 = sbr.rel (%p761) target = $region56
        $region55: #{tpu_custom_call.1} parent=51 // pred_region
          %s764 = sand.u32 %s98, 1
          %s765 = scalar_lea.sflag [#allocation4], %s764
          %s766 = sand.u32 %s98, 1
          %s767 = smul.addr %s766, 8
          %s768 = scalar_lea.vmem [#allocation8], %s767
          %769 = dma.done %s765, 128
        $region56: #{tpu_custom_call.1} parent=51 // pred_fallthru
          _
      $region52: #{tpu_custom_call.1} parent=5 // pred_fallthru
        _
    $region6: #{tpu_custom_call.1} parent=1 // loop_footer
      %s20 = sadd.s32 1, %s16
    $region7: #{tpu_custom_call.1} parent=1 // loop_footer_branch
      %15 = sbr.rel target = $region3
    $region8: #{tpu_custom_call.1} parent=1 // loop_exit
      _
    %770 = vsyncpa [#allocation3], 1
    %s771 = scalar_lea.sflag [#allocation3], 1
    %772 = vsyncpa %s771, 1
    %773 = vsyncpa [#allocation6], 1
    %774 = vsyncpa [#allocation4], 1
    %s775 = scalar_lea.sflag [#allocation4], 1
    %776 = vsyncpa %s775, 1

// kernel: tpu_custom_call.1
$region0: #{tpu_custom_call.1}
  #allocation0 [shape = 'u32[]', space=smem, size = 0x4, offset = 0x4, fixed_abs, tag = 'smem constant byte address 0x4 - core index']
  #allocation1 [shape = 'u32[144,128]{1,0:T(1,128)}', space=vmem, size = 0x12000, scoped, tag = 'internal scratch']
  %s0 = inlined_call_operand.hbm [shape: f32[16,32], index: 0, kind: input, shape index: {}]
  %s1 = inlined_call_operand.hbm [shape: f32[32,128], index: 1, kind: input, shape index: {}]
  %s2 = inlined_call_operand.hbm [shape: f32[3,128], index: 2, kind: input, shape index: {}]
  %s3 = inlined_call_operand.hbm [shape: f32[16,128], index: 3, kind: output, shape index: {}]
  %s4 = sld [smem:[#allocation0]]
  $region57: #{tpu_custom_call.1} parent=0
    _
  %s6 = ssub.s32 1, %s4
  %s7 = scalar_select 0, %s6, %s4
  $region1: #{tpu_custom_call.1} parent=0
    #allocation2 [shape = 'u8[8192]{0}', space=vmem, size = 0x2000, scoped, tag = 'input window, operand 0']
    #allocation3 [shape = 's32[2]{0}', space=sflag, size = 0x8, scoped, tag = 'scoped memory for tpu_custom_call.1']
    #allocation4 [shape = 's32[2]{0}', space=sflag, size = 0x8, scoped, tag = 'scoped memory for tpu_custom_call.1']
    #allocation5 [shape = 'u8[16384]{0}', space=vmem, size = 0x4000, scoped, tag = 'input window, operand 1, single buffered']
    #allocation6 [shape = 's32[1]{0}', space=sflag, size = 0x4, scoped, tag = 'scoped memory for tpu_custom_call.1']
    #allocation7 [shape = 'u8[2048]{0}', space=vmem, size = 0x800, scoped, tag = 'input window, operand 2, single buffered']
    #allocation8 [shape = 'u8[8192]{0}', space=vmem, size = 0x2000, scoped, tag = 'output window, operand 0']
    %8 = vsyncpa [#allocation3], 0
    %s9 = scalar_lea.sflag [#allocation3], 1
    %10 = vsyncpa %s9, 0
    %11 = vsyncpa [#allocation6], 0
    %12 = vsyncpa [#allocation4], 0
    %s13 = scalar_lea.sflag [#allocation4], 1
    %14 = vsyncpa %s13, 0
    loop: start=0, step=1, limit=4
    $region2: #{tpu_custom_call.1} parent=1 // loop_pre_header
      _
    $region3: #{tpu_custom_call.1} parent=1 // loop_header
      %s16 = sphi 0, %s20
      %p17 = scmp.ge.s32.totalorder %s16, 4
      %s26 = sphi 0, %s28
      %s29 = sphi 0, %s26
      %s30 = sphi 0, %s29
      %s46 = sphi 0, %s30
      %s50 = sphi 0, %s50
      %s52 = sphi 0, %s50
      %s53 = sphi 0, %s52
      %s67 = sphi 0, %s53
      %s71 = sphi 0, %s71
      %s73 = sphi 0, %s71
      %s74 = sphi 0, %s73
      %s88 = sphi 0, %s74
      %s94 = sphi 0, %s96
      %s97 = sphi 0, %s94
      %s98 = sphi 0, %s97
      %s114 = sphi 0, %s98
    $region4: #{tpu_custom_call.1} parent=1 // loop_header_branch
      %19 = sbr.rel (%p17) target = $region8
    $region5: #{tpu_custom_call.1} parent=1 // loop_body
      %s21 = ssub.s32 %s16, 1
      %s22 = ssub.s32 %s16, 2
      %s23 = sadd.s32 %s16, 1
      %s24 = ssub.s32 %s16, %s23
      %p25 = scmp.eq.s32.totalorder %s24, 0
      %s27 = sadd.s32 %s26, 1
      %s28 = scalar_select %p25, %s26, %s27
      %p31 = pneg %p25
      %p32 = scmp.eq.s32.totalorder %s16, 1
      %p33 = por %p31, %p32
      %p34 = scmp.ne.s32.totalorder %s26, %s29
      %p35 = scmp.eq.s32.totalorder %s16, 0
      %p36 = por %p34, %p35
      %p37 = scmp.ne.s32.totalorder %s26, %s29
      %p38 = scmp.eq.s32.totalorder %s21, 1
      %p39 = por %p37, %p38
      %p40 = scmp.ne.s32.totalorder %s29, %s30
      %p41 = scmp.eq.s32.totalorder %s21, 0
      %p42 = por %p40, %p41
      %p43 = scmp.ne.s32.totalorder %s29, %s30
      %p44 = scmp.eq.s32.totalorder %s22, 1
      %p45 = por %p43, %p44
      %p47 = scmp.ne.s32.totalorder %s30, %s46
      %p48 = scmp.eq.s32.totalorder %s22, 0
      %p49 = por %p47, %p48
      %s51 = sadd.s32 %s50, 1
      %p54 = scmp.eq.s32.totalorder %s16, 1
      %p55 = scmp.ne.s32.totalorder %s50, %s52
      %p56 = scmp.eq.s32.totalorder %s16, 0
      %p57 = por %p55, %p56
      %p58 = scmp.ne.s32.totalorder %s50, %s52
      %p59 = scmp.eq.s32.totalorder %s21, 1
      %p60 = por %p58, %p59
      %p61 = scmp.ne.s32.totalorder %s52, %s53
      %p62 = scmp.eq.s32.totalorder %s21, 0
      %p63 = por %p61, %p62
      %p64 = scmp.ne.s32.totalorder %s52, %s53
      %p65 = scmp.eq.s32.totalorder %s22, 1
      %p66 = por %p64, %p65
      %p68 = scmp.ne.s32.totalorder %s53, %s67
      %p69 = scmp.eq.s32.totalorder %s22, 0
      %p70 = por %p68, %p69
      %s72 = sadd.s32 %s71, 1
      %p75 = scmp.eq.s32.totalorder %s16, 1
      %p76 = scmp.ne.s32.totalorder %s71, %s73
      %p77 = scmp.eq.s32.totalorder %s16, 0
      %p78 = por %p76, %p77
      %p79 = scmp.ne.s32.totalorder %s71, %s73
      %p80 = scmp.eq.s32.totalorder %s21, 1
      %p81 = por %p79, %p80
      %p82 = scmp.ne.s32.totalorder %s73, %s74
      %p83 = scmp.eq.s32.totalorder %s21, 0
      %p84 = por %p82, %p83
      %p85 = scmp.ne.s32.totalorder %s73, %s74
      %p86 = scmp.eq.s32.totalorder %s22, 1
      %p87 = por %p85, %p86
      %p89 = scmp.ne.s32.totalorder %s74, %s88
      %p90 = scmp.eq.s32.totalorder %s22, 0
      %p91 = por %p89, %p90
      %s92 = ssub.s32 %s16, %s23
      %p93 = scmp.eq.s32.totalorder %s92, 0
      %s95 = sadd.s32 %s94, 1
      %s96 = scalar_select %p93, %s94, %s95
      %p99 = pneg %p93
      %p100 = scmp.eq.s32.totalorder %s16, 1
      %p101 = por %p99, %p100
      %p102 = scmp.ne.s32.totalorder %s94, %s97
      %p103 = scmp.eq.s32.totalorder %s16, 0
      %p104 = por %p102, %p103
      %p105 = scmp.ne.s32.totalorder %s94, %s97
      %p106 = scmp.eq.s32.totalorder %s21, 1
      %p107 = por %p105, %p106
      %p108 = scmp.ne.s32.totalorder %s97, %s98
      %p109 = scmp.eq.s32.totalorder %s21, 0
      %p110 = por %p108, %p109
      %p111 = scmp.ne.s32.totalorder %s97, %s98
      %p112 = scmp.eq.s32.totalorder %s22, 1
      %p113 = por %p111, %p112
      %p115 = scmp.ne.s32.totalorder %s98, %s114
      %p116 = scmp.eq.s32.totalorder %s22, 0
      %p117 = por %p115, %p116
      %p118 = scmp.le.s32.totalorder 1, %s16
      %p119 = scmp.lt.s32.totalorder %s16, 3
      %p120 = pnand %p118, %p119
      %p121 = pneg %p120
      // Predicated region
      $region9: #{tpu_custom_call.1} parent=5 // pred_check
        _
      $region10: #{tpu_custom_call.1} parent=5 // pred_check_branch
        %123 = sbr.rel (%p120) target = $region12
      $region11: #{tpu_custom_call.1} parent=5 // pred_region
        %s124 = ssub.s32 %s16, 1
        // Predicated region
        $region13: #{tpu_custom_call.1} parent=11 // pred_check
          %p125 = pneg %p63
        $region14: #{tpu_custom_call.1} parent=11 // pred_check_branch
          %127 = sbr.rel (%p125) target = $region16
        $region15: #{tpu_custom_call.1} parent=11 // pred_region
          %s129 = ssub.s32 512, 512
          %130 = vsyncadd [#allocation6], %s129
          %s131 = sshll.u32 [#allocation5], 4
          %s132 = int_to_ptr.vmem [resolvable:$true] %s131
          %137 = dma.hbm_to_vmem [thread:$0]  %s1, 512, %s132, [#allocation6], 128, 128, 8
        $region16: #{tpu_custom_call.1} parent=11 // pred_fallthru
          _
        // Predicated region
        $region17: #{tpu_custom_call.1} parent=11 // pred_check
          %p138 = pneg %p84
        $region18: #{tpu_custom_call.1} parent=11 // pred_check_branch
          %140 = sbr.rel (%p138) target = $region20
        $region19: #{tpu_custom_call.1} parent=11 // pred_region
          %s142 = ssub.s32 64, 64
          %143 = vsyncadd [#allocation6], %s142
          %s145 = sshll.u32 [#allocation7], 4
          %s146 = int_to_ptr.vmem [resolvable:$true] %s145
          %148 = dma.hbm_to_vmem [thread:$0]  %s2, 64, %s146, [#allocation6]
        $region20: #{tpu_custom_call.1} parent=11 // pred_fallthru
          _
      $region12: #{tpu_custom_call.1} parent=5 // pred_fallthru
        _
      %p149 = scmp.lt.s32.totalorder %s16, 2
      // Predicated region
      $region21: #{tpu_custom_call.1} parent=5 // pred_check
        %p150 = pneg %p149
      $region22: #{tpu_custom_call.1} parent=5 // pred_check_branch
        %152 = sbr.rel (%p150) target = $region24
      $region23: #{tpu_custom_call.1} parent=5 // pred_region
        // Predicated region
        $region25: #{tpu_custom_call.1} parent=23 // pred_check
          %p153 = pneg %p36
        $region26: #{tpu_custom_call.1} parent=23 // pred_check_branch
          %155 = sbr.rel (%p153) target = $region28
        $region27: #{tpu_custom_call.1} parent=23 // pred_region
          %s156 = sand.u32 %s26, 1
          %s157 = scalar_lea.sflag [#allocation3], %s156
          %s158 = sand.u32 %s26, 1
          %s159 = smul.addr %s158, 8
          %s160 = scalar_lea.vmem [#allocation2], %s159
          %s162 = ssub.s32 128, 128
          %163 = vsyncadd %s157, %s162
          %s164 = smul.addr %s16, 128
          %s165 = scalar_lea.hbm %s0, %s164
          %s167 = sshll.u32 %s160, 4
          %s168 = int_to_ptr.vmem [resolvable:$true] %s167
          %170 = dma.hbm_to_vmem [thread:$0]  %s165, 128, %s168, %s157
        $region28: #{tpu_custom_call.1} parent=23 // pred_fallthru
          _
      $region24: #{tpu_custom_call.1} parent=5 // pred_fallthru
        _
      %p171 = scmp.le.s32.totalorder 1, %s16
      %p172 = scmp.lt.s32.totalorder %s16, 3
      %p173 = pnand %p171, %p172
      %p174 = pneg %p173
      // Predicated region
      $region29: #{tpu_custom_call.1} parent=5 // pred_check
        _
      $region30: #{tpu_custom_call.1} parent=5 // pred_check_branch
        %176 = sbr.rel (%p173) target = $region32
      $region31: #{tpu_custom_call.1} parent=5 // pred_region
        %s177 = ssub.s32 %s16, 1
        %s178 = sand.u32 %s29, 1
        %s179 = scalar_lea.sflag [#allocation3], %s178
        %s180 = sand.u32 %s29, 1
        %s181 = smul.addr %s180, 8
        %s182 = scalar_lea.vmem [#allocation2], %s181
        // Predicated region
        $region33: #{tpu_custom_call.1} parent=31 // pred_check
          %p183 = pneg %p42
        $region34: #{tpu_custom_call.1} parent=31 // pred_check_branch
          %185 = sbr.rel (%p183) target = $region36
        $region35: #{tpu_custom_call.1} parent=31 // pred_region
          %186 = dma.done %s179, 128
        $region36: #{tpu_custom_call.1} parent=31 // pred_fallthru
          _
        // Predicated region
        $region37: #{tpu_custom_call.1} parent=31 // pred_check
          %p187 = pneg %p63
        $region38: #{tpu_custom_call.1} parent=31 // pred_check_branch
          %189 = sbr.rel (%p187) target = $region40
        $region39: #{tpu_custom_call.1} parent=31 // pred_region
          %190 = dma.done [#allocation6], 512
        $region40: #{tpu_custom_call.1} parent=31 // pred_fallthru
          _
        // Predicated region
        $region41: #{tpu_custom_call.1} parent=31 // pred_check
          %p191 = pneg %p84
        $region42: #{tpu_custom_call.1} parent=31 // pred_check_branch
          %193 = sbr.rel (%p191) target = $region44
        $region43: #{tpu_custom_call.1} parent=31 // pred_region
          %194 = dma.done [#allocation6], 64
        $region44: #{tpu_custom_call.1} parent=31 // pred_fallthru
          _
        %s195 = sand.u32 %s29, 1
        %s196 = scalar_lea.sflag [#allocation3], %s195
        %s197 = sand.u32 %s29, 1
        %s198 = smul.addr %s197, 8
        %s199 = scalar_lea.vmem [#allocation2], %s198
        %p200 = pneg %p42
        %p201 = pneg %p39
        %p202 = pneg %p63
        %p203 = pneg %p60
        %p204 = pneg %p84
        %p205 = pneg %p81
        %p206 = pneg %p110
        %p207 = pneg %p107
        %s208 = sand.u32 %s97, 1
        %s209 = scalar_lea.sflag [#allocation4], %s208
        %s210 = sand.u32 %s97, 1
        %s211 = smul.addr %s210, 8
        %s212 = scalar_lea.vmem [#allocation8], %s211
        %v213 = vld [vmem:[%s182] sm:$0xff]
        %v214 = vld [vmem:[#allocation5] sm:$0xff]
        %v215 = vld [vmem:[#allocation5 + $0x8] sm:$0xff]
        %v216 = vld [vmem:[#allocation5 + $0x10] sm:$0xff]
        %v217 = vld [vmem:[#allocation5 + $0x18] sm:$0xff]
        %v218 = vld [vmem:[#allocation7] sm:$0x7]
        %v219 = vlaneseq
        %v220 = vshrl.u32 %v219, 7
        %v221 = vsub.s32 0, %v220
        %v222 = vrot.slane %v218, %v221
        %vm223 = vcmask 261120
        %v225 = vsel %vm223, %v213, 0
        %227 = vmatprep.subr.mxu0 0.0
        %228 = vmatpush1.msra.mxu0 0.0
        %229 = vmatprep.subr.mxu0 0.0
        %230 = vmatpush1.msra.mxu0 0.0
        %231 = vmatprep.subr.mxu0 0.0
        %232 = vmatpush1.msra.mxu0 0.0
        %233 = vmatprep.subr.mxu0 0.0
        %234 = vmatpush1.msra.mxu0 0.0
        %235 = vmatprep.subr.mxu0 0.0
        %236 = vmatpush1.msra.mxu0 0.0
        %237 = vmatprep.subr.mxu0 0.0
        %238 = vmatpush1.msra.mxu0 0.0
        %239 = vmatprep.subr.mxu0 0.0
        %240 = vmatpush1.msra.mxu0 0.0
        %241 = vmatprep.subr.mxu0 0.0
        %242 = vmatpush1.msra.mxu0 0.0
        %243 = vmatprep.subr.mxu0 0.0
        %244 = vmatpush1.msra.mxu0 0.0
        %245 = vmatprep.subr.mxu0 0.0
        %246 = vmatpush1.msra.mxu0 0.0
        %247 = vmatprep.subr.mxu0 0.0
        %248 = vmatpush1.msra.mxu0 0.0
        %249 = vmatprep.subr.mxu0 0.0
        %250 = vmatpush1.msra.mxu0 0.0
        %251 = vmatprep.subr.mxu0 0.0
        %v252 = vand.u32 %v217, 4294901760
        %253 = vmatpush1.msra.mxu0 %v252
        %254 = vmatprep.subr.mxu0 0.0
        %v255 = vand.u32 %v216, 4294901760
        %256 = vmatpush1.msra.mxu0 %v255
        %257 = vmatprep.subr.mxu0 0.0
        %v258 = vand.u32 %v215, 4294901760
        %259 = vmatpush1.msra.mxu0 %v258
        %260 = vmatprep.subr.mxu0 0.0
        %v261 = vand.u32 %v214, 4294901760
        %262 = vmatpush1.msra.mxu0 %v261
        %263 = vmatprep.subr.mxu0 0.0
        %264 = vmatpush2.msra.mxu0 0.0
        %265 = vmatprep.subr.mxu0 0.0
        %266 = vmatpush2.msra.mxu0 0.0
        %267 = vmatprep.subr.mxu0 0.0
        %268 = vmatpush2.msra.mxu0 0.0
        %269 = vmatprep.subr.mxu0 0.0
        %270 = vmatpush2.msra.mxu0 0.0
        %271 = vmatprep.subr.mxu0 0.0
        %272 = vmatpush2.msra.mxu0 0.0
        %273 = vmatprep.subr.mxu0 0.0
        %274 = vmatpush2.msra.mxu0 0.0
        %275 = vmatprep.subr.mxu0 0.0
        %276 = vmatpush2.msra.mxu0 0.0
        %277 = vmatprep.subr.mxu0 0.0
        %278 = vmatpush2.msra.mxu0 0.0
        %279 = vmatprep.subr.mxu0 0.0
        %280 = vmatpush2.msra.mxu0 0.0
        %281 = vmatprep.subr.mxu0 0.0
        %282 = vmatpush2.msra.mxu0 0.0
        %283 = vmatprep.subr.mxu0 0.0
        %284 = vmatpush2.msra.mxu0 0.0
        %285 = vmatprep.subr.mxu0 0.0
        %286 = vmatpush2.msra.mxu0 0.0
        %287 = vmatprep.subr.mxu0 0.0
        %288 = vmatpush2.msra.mxu0 0.0
        %289 = vmatprep.subr.mxu0 0.0
        %290 = vmatpush2.msra.mxu0 0.0
        %291 = vmatprep.subr.mxu0 0.0
        %292 = vmatpush2.msra.mxu0 0.0
        %293 = vmatprep.subr.mxu0 0.0
        %294 = vmatpush2.msra.mxu0 0.0
        %295 = vmatprep.mubr.f32.mxu0 0.0
        %v296 = vand.u32 %v225, 4294901760
        %v297 = vsub.f32 %v225, %v296
        %v298 = vand.u32 %v297, 4294901760
        %v299 = vsub.f32 %v297, %v298
        %v300 = vand.u32 %v299, 4294901760
        %301 = vmatmul.mubr.f32.gmra.mxu0 %v300
        %v302 = vpop.f32.mrf.mxu0
        %v303 = vadd.f32 %v222, %v302
        %v304 = vpop.f32.mrf.mxu0
        %305 = vdwg.mxu0
        %306 = vmatprep.subr.mxu0 0.0
        %307 = vmatpush1.msra.mxu0 0.0
        %308 = vmatprep.subr.mxu0 0.0
        %309 = vmatpush1.msra.mxu0 0.0
        %310 = vmatprep.subr.mxu0 0.0
        %311 = vmatpush1.msra.mxu0 0.0
        %312 = vmatprep.subr.mxu0 0.0
        %313 = vmatpush1.msra.mxu0 0.0
        %314 = vmatprep.subr.mxu0 0.0
        %315 = vmatpush1.msra.mxu0 0.0
        %316 = vmatprep.subr.mxu0 0.0
        %317 = vmatpush1.msra.mxu0 0.0
        %318 = vmatprep.subr.mxu0 0.0
        %319 = vmatpush1.msra.mxu0 0.0
        %320 = vmatprep.subr.mxu0 0.0
        %321 = vmatpush1.msra.mxu0 0.0
        %322 = vmatprep.subr.mxu0 0.0
        %323 = vmatpush1.msra.mxu0 0.0
        %324 = vmatprep.subr.mxu0 0.0
        %325 = vmatpush1.msra.mxu0 0.0
        %326 = vmatprep.subr.mxu0 0.0
        %327 = vmatpush1.msra.mxu0 0.0
        %328 = vmatprep.subr.mxu0 0.0
        %329 = vmatpush1.msra.mxu0 0.0
        %330 = vmatprep.subr.mxu0 0.0
        %v331 = vand.u32 %v217, 4294901760
        %v332 = vsub.f32 %v217, %v331
        %v333 = vand.u32 %v332, 4294901760
        %v334 = vsub.f32 %v332, %v333
        %v335 = vand.u32 %v334, 4294901760
        %336 = vmatpush1.msra.mxu0 %v335
        %337 = vmatprep.subr.mxu0 0.0
        %v338 = vand.u32 %v216, 4294901760
        %v339 = vsub.f32 %v216, %v338
        %v340 = vand.u32 %v339, 4294901760
        %v341 = vsub.f32 %v339, %v340
        %v342 = vand.u32 %v341, 4294901760
        %343 = vmatpush1.msra.mxu0 %v342
        %344 = vmatprep.subr.mxu0 0.0
        %v345 = vand.u32 %v215, 4294901760
        %v346 = vsub.f32 %v215, %v345
        %v347 = vand.u32 %v346, 4294901760
        %v348 = vsub.f32 %v346, %v347
        %v349 = vand.u32 %v348, 4294901760
        %350 = vmatpush1.msra.mxu0 %v349
        %351 = vmatprep.subr.mxu0 0.0
        %v352 = vand.u32 %v214, 4294901760
        %v353 = vsub.f32 %v214, %v352
        %v354 = vand.u32 %v353, 4294901760
        %v355 = vsub.f32 %v353, %v354
        %v356 = vand.u32 %v355, 4294901760
        %357 = vmatpush1.msra.mxu0 %v356
        %358 = vmatprep.subr.mxu0 0.0
        %359 = vmatpush2.msra.mxu0 0.0
        %360 = vmatprep.subr.mxu0 0.0
        %361 = vmatpush2.msra.mxu0 0.0
        %362 = vmatprep.subr.mxu0 0.0
        %363 = vmatpush2.msra.mxu0 0.0
        %364 = vmatprep.subr.mxu0 0.0
        %365 = vmatpush2.msra.mxu0 0.0
        %366 = vmatprep.subr.mxu0 0.0
        %367 = vmatpush2.msra.mxu0 0.0
        %368 = vmatprep.subr.mxu0 0.0
        %369 = vmatpush2.msra.mxu0 0.0
        %370 = vmatprep.subr.mxu0 0.0
        %371 = vmatpush2.msra.mxu0 0.0
        %372 = vmatprep.subr.mxu0 0.0
        %373 = vmatpush2.msra.mxu0 0.0
        %374 = vmatprep.subr.mxu0 0.0
        %375 = vmatpush2.msra.mxu0 0.0
        %376 = vmatprep.subr.mxu0 0.0
        %377 = vmatpush2.msra.mxu0 0.0
        %378 = vmatprep.subr.mxu0 0.0
        %379 = vmatpush2.msra.mxu0 0.0
        %380 = vmatprep.subr.mxu0 0.0
        %381 = vmatpush2.msra.mxu0 0.0
        %382 = vmatprep.subr.mxu0 0.0
        %383 = vmatpush2.msra.mxu0 0.0
        %384 = vmatprep.subr.mxu0 0.0
        %385 = vmatpush2.msra.mxu0 0.0
        %386 = vmatprep.subr.mxu0 0.0
        %387 = vmatpush2.msra.mxu0 0.0
        %388 = vmatprep.subr.mxu0 0.0
        %389 = vmatpush2.msra.mxu0 0.0
        %390 = vmatprep.mubr.f32.mxu0 0.0
        %v391 = vand.u32 %v225, 4294901760
        %392 = vmatmul.mubr.f32.gmra.mxu0 %v391
        %v393 = vpop.f32.mrf.mxu0
        %v394 = vadd.f32 %v303, %v393
        %v395 = vpop.f32.mrf.mxu0
        %396 = vdwg.mxu0
        %397 = vmatprep.subr.mxu0 0.0
        %398 = vmatpush1.msra.mxu0 0.0
        %399 = vmatprep.subr.mxu0 0.0
        %400 = vmatpush1.msra.mxu0 0.0
        %401 = vmatprep.subr.mxu0 0.0
        %402 = vmatpush1.msra.mxu0 0.0
        %403 = vmatprep.subr.mxu0 0.0
        %404 = vmatpush1.msra.mxu0 0.0
        %405 = vmatprep.subr.mxu0 0.0
        %406 = vmatpush1.msra.mxu0 0.0
        %407 = vmatprep.subr.mxu0 0.0
        %408 = vmatpush1.msra.mxu0 0.0
        %409 = vmatprep.subr.mxu0 0.0
        %410 = vmatpush1.msra.mxu0 0.0
        %411 = vmatprep.subr.mxu0 0.0
        %412 = vmatpush1.msra.mxu0 0.0
        %413 = vmatprep.subr.mxu0 0.0
        %414 = vmatpush1.msra.mxu0 0.0
        %415 = vmatprep.subr.mxu0 0.0
        %416 = vmatpush1.msra.mxu0 0.0
        %417 = vmatprep.subr.mxu0 0.0
        %418 = vmatpush1.msra.mxu0 0.0
        %419 = vmatprep.subr.mxu0 0.0
        %420 = vmatpush1.msra.mxu0 0.0
        %421 = vmatprep.subr.mxu0 0.0
        %v422 = vand.u32 %v217, 4294901760
        %v423 = vsub.f32 %v217, %v422
        %424 = vmatpush1.msra.mxu0 %v423
        %425 = vmatprep.subr.mxu0 0.0
        %v426 = vand.u32 %v216, 4294901760
        %v427 = vsub.f32 %v216, %v426
        %428 = vmatpush1.msra.mxu0 %v427
        %429 = vmatprep.subr.mxu0 0.0
        %v430 = vand.u32 %v215, 4294901760
        %v431 = vsub.f32 %v215, %v430
        %432 = vmatpush1.msra.mxu0 %v431
        %433 = vmatprep.subr.mxu0 0.0
        %v434 = vand.u32 %v214, 4294901760
        %v435 = vsub.f32 %v214, %v434
        %436 = vmatpush1.msra.mxu0 %v435
        %437 = vmatprep.subr.mxu0 0.0
        %438 = vmatpush2.msra.mxu0 0.0
        %439 = vmatprep.subr.mxu0 0.0
        %440 = vmatpush2.msra.mxu0 0.0
        %441 = vmatprep.subr.mxu0 0.0
        %442 = vmatpush2.msra.mxu0 0.0
        %443 = vmatprep.subr.mxu0 0.0
        %444 = vmatpush2.msra.mxu0 0.0
        %445 = vmatprep.subr.mxu0 0.0
        %446 = vmatpush2.msra.mxu0 0.0
        %447 = vmatprep.subr.mxu0 0.0
        %448 = vmatpush2.msra.mxu0 0.0
        %449 = vmatprep.subr.mxu0 0.0
        %450 = vmatpush2.msra.mxu0 0.0
        %451 = vmatprep.subr.mxu0 0.0
        %452 = vmatpush2.msra.mxu0 0.0
        %453 = vmatprep.subr.mxu0 0.0
        %454 = vmatpush2.msra.mxu0 0.0
        %455 = vmatprep.subr.mxu0 0.0
        %456 = vmatpush2.msra.mxu0 0.0
        %457 = vmatprep.subr.mxu0 0.0
        %458 = vmatpush2.msra.mxu0 0.0
        %459 = vmatprep.subr.mxu0 0.0
        %460 = vmatpush2.msra.mxu0 0.0
        %461 = vmatprep.subr.mxu0 0.0
        %462 = vmatpush2.msra.mxu0 0.0
        %463 = vmatprep.subr.mxu0 0.0
        %464 = vmatpush2.msra.mxu0 0.0
        %465 = vmatprep.subr.mxu0 0.0
        %466 = vmatpush2.msra.mxu0 0.0
        %467 = vmatprep.subr.mxu0 0.0
        %468 = vmatpush2.msra.mxu0 0.0
        %469 = vmatprep.mubr.f32.mxu0 0.0
        %v470 = vand.u32 %v225, 4294901760
        %v471 = vsub.f32 %v225, %v470
        %472 = vmatmul.mubr.f32.gmra.mxu0 %v471
        %v473 = vpop.f32.mrf.mxu0
        %v474 = vadd.f32 %v394, %v473
        %v475 = vpop.f32.mrf.mxu0
        %476 = vdwg.mxu0
        %477 = vmatprep.subr.mxu0 0.0
        %478 = vmatpush1.msra.mxu0 0.0
        %479 = vmatprep.subr.mxu0 0.0
        %480 = vmatpush1.msra.mxu0 0.0
        %481 = vmatprep.subr.mxu0 0.0
        %482 = vmatpush1.msra.mxu0 0.0
        %483 = vmatprep.subr.mxu0 0.0
        %484 = vmatpush1.msra.mxu0 0.0
        %485 = vmatprep.subr.mxu0 0.0
        %486 = vmatpush1.msra.mxu0 0.0
        %487 = vmatprep.subr.mxu0 0.0
        %488 = vmatpush1.msra.mxu0 0.0
        %489 = vmatprep.subr.mxu0 0.0
        %490 = vmatpush1.msra.mxu0 0.0
        %491 = vmatprep.subr.mxu0 0.0
        %492 = vmatpush1.msra.mxu0 0.0
        %493 = vmatprep.subr.mxu0 0.0
        %494 = vmatpush1.msra.mxu0 0.0
        %495 = vmatprep.subr.mxu0 0.0
        %496 = vmatpush1.msra.mxu0 0.0
        %497 = vmatprep.subr.mxu0 0.0
        %498 = vmatpush1.msra.mxu0 0.0
        %499 = vmatprep.subr.mxu0 0.0
        %500 = vmatpush1.msra.mxu0 0.0
        %501 = vmatprep.subr.mxu0 0.0
        %v502 = vand.u32 %v217, 4294901760
        %503 = vmatpush1.msra.mxu0 %v502
        %504 = vmatprep.subr.mxu0 0.0
        %v505 = vand.u32 %v216, 4294901760
        %506 = vmatpush1.msra.mxu0 %v505
        %507 = vmatprep.subr.mxu0 0.0
        %v508 = vand.u32 %v215, 4294901760
        %509 = vmatpush1.msra.mxu0 %v508
        %510 = vmatprep.subr.mxu0 0.0
        %v511 = vand.u32 %v214, 4294901760
        %512 = vmatpush1.msra.mxu0 %v511
        %513 = vmatprep.subr.mxu0 0.0
        %514 = vmatpush2.msra.mxu0 0.0
        %515 = vmatprep.subr.mxu0 0.0
        %516 = vmatpush2.msra.mxu0 0.0
        %517 = vmatprep.subr.mxu0 0.0
        %518 = vmatpush2.msra.mxu0 0.0
        %519 = vmatprep.subr.mxu0 0.0
        %520 = vmatpush2.msra.mxu0 0.0
        %521 = vmatprep.subr.mxu0 0.0
        %522 = vmatpush2.msra.mxu0 0.0
        %523 = vmatprep.subr.mxu0 0.0
        %524 = vmatpush2.msra.mxu0 0.0
        %525 = vmatprep.subr.mxu0 0.0
        %526 = vmatpush2.msra.mxu0 0.0
        %527 = vmatprep.subr.mxu0 0.0
        %528 = vmatpush2.msra.mxu0 0.0
        %529 = vmatprep.subr.mxu0 0.0
        %530 = vmatpush2.msra.mxu0 0.0
        %531 = vmatprep.subr.mxu0 0.0
        %532 = vmatpush2.msra.mxu0 0.0
        %533 = vmatprep.subr.mxu0 0.0
        %534 = vmatpush2.msra.mxu0 0.0
        %535 = vmatprep.subr.mxu0 0.0
        %536 = vmatpush2.msra.mxu0 0.0
        %537 = vmatprep.subr.mxu0 0.0
        %538 = vmatpush2.msra.mxu0 0.0
        %539 = vmatprep.subr.mxu0 0.0
        %540 = vmatpush2.msra.mxu0 0.0
        %541 = vmatprep.subr.mxu0 0.0
        %542 = vmatpush2.msra.mxu0 0.0
        %543 = vmatprep.subr.mxu0 0.0
        %544 = vmatpush2.msra.mxu0 0.0
        %545 = vmatprep.mubr.f32.mxu0 0.0
        %v546 = vand.u32 %v225, 4294901760
        %v547 = vsub.f32 %v225, %v546
        %v548 = vand.u32 %v547, 4294901760
        %549 = vmatmul.mubr.f32.gmra.mxu0 %v548
        %v550 = vpop.f32.mrf.mxu0
        %v551 = vadd.f32 %v474, %v550
        %v552 = vpop.f32.mrf.mxu0
        %553 = vdwg.mxu0
        %554 = vmatprep.subr.mxu0 0.0
        %555 = vmatpush1.msra.mxu0 0.0
        %556 = vmatprep.subr.mxu0 0.0
        %557 = vmatpush1.msra.mxu0 0.0
        %558 = vmatprep.subr.mxu0 0.0
        %559 = vmatpush1.msra.mxu0 0.0
        %560 = vmatprep.subr.mxu0 0.0
        %561 = vmatpush1.msra.mxu0 0.0
        %562 = vmatprep.subr.mxu0 0.0
        %563 = vmatpush1.msra.mxu0 0.0
        %564 = vmatprep.subr.mxu0 0.0
        %565 = vmatpush1.msra.mxu0 0.0
        %566 = vmatprep.subr.mxu0 0.0
        %567 = vmatpush1.msra.mxu0 0.0
        %568 = vmatprep.subr.mxu0 0.0
        %569 = vmatpush1.msra.mxu0 0.0
        %570 = vmatprep.subr.mxu0 0.0
        %571 = vmatpush1.msra.mxu0 0.0
        %572 = vmatprep.subr.mxu0 0.0
        %573 = vmatpush1.msra.mxu0 0.0
        %574 = vmatprep.subr.mxu0 0.0
        %575 = vmatpush1.msra.mxu0 0.0
        %576 = vmatprep.subr.mxu0 0.0
        %577 = vmatpush1.msra.mxu0 0.0
        %578 = vmatprep.subr.mxu0 0.0
        %v579 = vand.u32 %v217, 4294901760
        %v580 = vsub.f32 %v217, %v579
        %v581 = vand.u32 %v580, 4294901760
        %582 = vmatpush1.msra.mxu0 %v581
        %583 = vmatprep.subr.mxu0 0.0
        %v584 = vand.u32 %v216, 4294901760
        %v585 = vsub.f32 %v216, %v584
        %v586 = vand.u32 %v585, 4294901760
        %587 = vmatpush1.msra.mxu0 %v586
        %588 = vmatprep.subr.mxu0 0.0
        %v589 = vand.u32 %v215, 4294901760
        %v590 = vsub.f32 %v215, %v589
        %v591 = vand.u32 %v590, 4294901760
        %592 = vmatpush1.msra.mxu0 %v591
        %593 = vmatprep.subr.mxu0 0.0
        %v594 = vand.u32 %v214, 4294901760
        %v595 = vsub.f32 %v214, %v594
        %v596 = vand.u32 %v595, 4294901760
        %597 = vmatpush1.msra.mxu0 %v596
        %598 = vmatprep.subr.mxu0 0.0
        %599 = vmatpush2.msra.mxu0 0.0
        %600 = vmatprep.subr.mxu0 0.0
        %601 = vmatpush2.msra.mxu0 0.0
        %602 = vmatprep.subr.mxu0 0.0
        %603 = vmatpush2.msra.mxu0 0.0
        %604 = vmatprep.subr.mxu0 0.0
        %605 = vmatpush2.msra.mxu0 0.0
        %606 = vmatprep.subr.mxu0 0.0
        %607 = vmatpush2.msra.mxu0 0.0
        %608 = vmatprep.subr.mxu0 0.0
        %609 = vmatpush2.msra.mxu0 0.0
        %610 = vmatprep.subr.mxu0 0.0
        %611 = vmatpush2.msra.mxu0 0.0
        %612 = vmatprep.subr.mxu0 0.0
        %613 = vmatpush2.msra.mxu0 0.0
        %614 = vmatprep.subr.mxu0 0.0
        %615 = vmatpush2.msra.mxu0 0.0
        %616 = vmatprep.subr.mxu0 0.0
        %617 = vmatpush2.msra.mxu0 0.0
        %618 = vmatprep.subr.mxu0 0.0
        %619 = vmatpush2.msra.mxu0 0.0
        %620 = vmatprep.subr.mxu0 0.0
        %621 = vmatpush2.msra.mxu0 0.0
        %622 = vmatprep.subr.mxu0 0.0
        %623 = vmatpush2.msra.mxu0 0.0
        %624 = vmatprep.subr.mxu0 0.0
        %625 = vmatpush2.msra.mxu0 0.0
        %626 = vmatprep.subr.mxu0 0.0
        %627 = vmatpush2.msra.mxu0 0.0
        %628 = vmatprep.subr.mxu0 0.0
        %629 = vmatpush2.msra.mxu0 0.0
        %630 = vmatprep.mubr.f32.mxu0 0.0
        %v631 = vand.u32 %v225, 4294901760
        %632 = vmatmul.mubr.f32.gmra.mxu0 %v631
        %v633 = vpop.f32.mrf.mxu0
        %v634 = vadd.f32 %v551, %v633
        %v635 = vpop.f32.mrf.mxu0
        %636 = vdwg.mxu0
        %637 = vmatprep.subr.mxu0 0.0
        %638 = vmatpush1.msra.mxu0 0.0
        %639 = vmatprep.subr.mxu0 0.0
        %640 = vmatpush1.msra.mxu0 0.0
        %641 = vmatprep.subr.mxu0 0.0
        %642 = vmatpush1.msra.mxu0 0.0
        %643 = vmatprep.subr.mxu0 0.0
        %644 = vmatpush1.msra.mxu0 0.0
        %645 = vmatprep.subr.mxu0 0.0
        %646 = vmatpush1.msra.mxu0 0.0
        %647 = vmatprep.subr.mxu0 0.0
        %648 = vmatpush1.msra.mxu0 0.0
        %649 = vmatprep.subr.mxu0 0.0
        %650 = vmatpush1.msra.mxu0 0.0
        %651 = vmatprep.subr.mxu0 0.0
        %652 = vmatpush1.msra.mxu0 0.0
        %653 = vmatprep.subr.mxu0 0.0
        %654 = vmatpush1.msra.mxu0 0.0
        %655 = vmatprep.subr.mxu0 0.0
        %656 = vmatpush1.msra.mxu0 0.0
        %657 = vmatprep.subr.mxu0 0.0
        %658 = vmatpush1.msra.mxu0 0.0
        %659 = vmatprep.subr.mxu0 0.0
        %660 = vmatpush1.msra.mxu0 0.0
        %661 = vmatprep.subr.mxu0 0.0
        %v662 = vand.u32 %v217, 4294901760
        %663 = vmatpush1.msra.mxu0 %v662
        %664 = vmatprep.subr.mxu0 0.0
        %v665 = vand.u32 %v216, 4294901760
        %666 = vmatpush1.msra.mxu0 %v665
        %667 = vmatprep.subr.mxu0 0.0
        %v668 = vand.u32 %v215, 4294901760
        %669 = vmatpush1.msra.mxu0 %v668
        %670 = vmatprep.subr.mxu0 0.0
        %v671 = vand.u32 %v214, 4294901760
        %672 = vmatpush1.msra.mxu0 %v671
        %673 = vmatprep.subr.mxu0 0.0
        %674 = vmatpush2.msra.mxu0 0.0
        %675 = vmatprep.subr.mxu0 0.0
        %676 = vmatpush2.msra.mxu0 0.0
        %677 = vmatprep.subr.mxu0 0.0
        %678 = vmatpush2.msra.mxu0 0.0
        %679 = vmatprep.subr.mxu0 0.0
        %680 = vmatpush2.msra.mxu0 0.0
        %681 = vmatprep.subr.mxu0 0.0
        %682 = vmatpush2.msra.mxu0 0.0
        %683 = vmatprep.subr.mxu0 0.0
        %684 = vmatpush2.msra.mxu0 0.0
        %685 = vmatprep.subr.mxu0 0.0
        %686 = vmatpush2.msra.mxu0 0.0
        %687 = vmatprep.subr.mxu0 0.0
        %688 = vmatpush2.msra.mxu0 0.0
        %689 = vmatprep.subr.mxu0 0.0
        %690 = vmatpush2.msra.mxu0 0.0
        %691 = vmatprep.subr.mxu0 0.0
        %692 = vmatpush2.msra.mxu0 0.0
        %693 = vmatprep.subr.mxu0 0.0
        %694 = vmatpush2.msra.mxu0 0.0
        %695 = vmatprep.subr.mxu0 0.0
        %696 = vmatpush2.msra.mxu0 0.0
        %697 = vmatprep.subr.mxu0 0.0
        %698 = vmatpush2.msra.mxu0 0.0
        %699 = vmatprep.subr.mxu0 0.0
        %700 = vmatpush2.msra.mxu0 0.0
        %701 = vmatprep.subr.mxu0 0.0
        %702 = vmatpush2.msra.mxu0 0.0
        %703 = vmatprep.subr.mxu0 0.0
        %704 = vmatpush2.msra.mxu0 0.0
        %705 = vmatprep.mubr.f32.mxu0 0.0
        %v706 = vand.u32 %v225, 4294901760
        %707 = vmatmul.mubr.f32.gmra.mxu0 %v706
        %v708 = vpop.f32.mrf.mxu0
        %v709 = vadd.f32 %v634, %v708
        %v710 = vpop.f32.mrf.mxu0
        %711 = vdwg.mxu0
        %v712 = vlaneseq
        %v713 = vand.u32 %v712, 127
        %vm714 = vcmp.lt.s32.totalorder %v713, 64
        %715 = vadd.xlane.f32.xlu0 %v709
        %v716 = vpop.xlane.xlu0 %715
        %v717 = vmul.f32 %v716, 0.015625
        %v718 = vsub.f32 %v709, %v717
        %v719 = vsel %vm714, %v718, 0.0
        %v720 = vmul.f32 %v719, %v719
        %721 = vadd.xlane.f32.xlu0 %v720
        %v722 = vpop.xlane.xlu0 %721
        %v723 = vmul.f32 %v722, 0.015625
        %v724 = vadd.f32 %v723, 1e-12
        %v725 = vrsqrt.pop %v724
        %v726 = vmul.f32 %v719, %v725
        %v727 = vlaneseq
        %v728 = vshrl.u32 %v727, 7
        %v729 = vsub.s32 1, %v728
        %v730 = vrot.slane %v218, %v729
        %v731 = vmul.f32 %v726, %v730
        %v732 = vlaneseq
        %v733 = vshrl.u32 %v732, 7
        %v734 = vsub.s32 2, %v733
        %v735 = vrot.slane %v218, %v734
        %v736 = vadd.f32 %v731, %v735
        %737 = vst [vmem:[%s212] sm:$0xff] %v736
        %s738 = sand.u32 %s97, 1
        %s739 = scalar_lea.sflag [#allocation4], %s738
        %s740 = sand.u32 %s97, 1
        %s741 = smul.addr %s740, 8
        %s742 = scalar_lea.vmem [#allocation8], %s741
        // Predicated region
        $region45: #{tpu_custom_call.1} parent=31 // pred_check
          %p743 = pneg %p107
        $region46: #{tpu_custom_call.1} parent=31 // pred_check_branch
          %745 = sbr.rel (%p743) target = $region48
        $region47: #{tpu_custom_call.1} parent=31 // pred_region
          %s747 = ssub.s32 128, 128
          %748 = vsyncadd %s739, %s747
          %s749 = smul.addr %s21, 128
          %s750 = scalar_lea.hbm %s3, %s749
          %s752 = sshll.u32 %s742, 4
          %s753 = int_to_ptr.vmem [resolvable:$true] %s752
          %755 = dma.vmem_to_hbm [thread:$0]  %s753, 128, %s750, %s739
        $region48: #{tpu_custom_call.1} parent=31 // pred_fallthru
          _
      $region32: #{tpu_custom_call.1} parent=5 // pred_fallthru
        _
      %p756 = scmp.le.s32.totalorder 2, %s16
      // Predicated region
      $region49: #{tpu_custom_call.1} parent=5 // pred_check
        %p757 = pneg %p756
      $region50: #{tpu_custom_call.1} parent=5 // pred_check_branch
        %759 = sbr.rel (%p757) target = $region52
      $region51: #{tpu_custom_call.1} parent=5 // pred_region
        %s760 = ssub.s32 %s16, 2
        // Predicated region
        $region53: #{tpu_custom_call.1} parent=51 // pred_check
          %p761 = pneg %p113
        $region54: #{tpu_custom_call.1} parent=51 // pred_check_branch
          %763 = sbr.rel (%p761) target = $region56
        $region55: #{tpu_custom_call.1} parent=51 // pred_region
          %s764 = sand.u32 %s98, 1
          %s765 = scalar_lea.sflag [#allocation4], %s764
          %s766 = sand.u32 %s98, 1
          %s767 = smul.addr %s766, 8
          %s768 = scalar_lea.vmem [#allocation8], %s767
          %769 = dma.done %s765, 128
        $region56: #{tpu_custom_call.1} parent=51 // pred_fallthru
          _
      $region52: #{tpu_custom_call.1} parent=5 // pred_fallthru
        _
    $region6: #{tpu_custom_call.1} parent=1 // loop_footer
      %s20 = sadd.s32 1, %s16
    $region7: #{tpu_custom_call.1} parent=1 // loop_footer_branch
      %15 = sbr.rel target = $region3
    $region8: #{tpu_custom_call.1} parent=1 // loop_exit
      _
    %770 = vsyncpa [#allocation3], 1
    %s771 = scalar_lea.sflag [#allocation3], 1
    %772 = vsyncpa %s771, 1
    %773 = vsyncpa [#allocation6], 1
    %774 = vsyncpa [#allocation4], 1
    %s775 = scalar_lea.sflag [#allocation4], 1
    %776 = vsyncpa %s775, 1

</llo_original>
